<compile_context>
chip_gen: v5e
topology: v5e:2x2
jax: 0.10.0
libtpu: 0.0.40
codegen_flags: <defaults>
</compile_context>

<pallas_src>
import functools

import jax
import jax.numpy as jnp
import numpy as np
from jax.experimental import pallas as pl
from jax.experimental.pallas import tpu as pltpu


# ----------------------------------------------------------------------------
# Fused Pallas kernel
# ----------------------------------------------------------------------------
def _fused_rnn_kernel(num_layers, hidden, seq_len, d_in0, d_pad,
                      x_ref, w_ref, b_ref, head_ref,
                      preds_ref, hlast_ref, h_scratch):
    """All LSTM layers + Linear head in one invocation (batch = 1).

    Refs (all VMEM):
      x_ref     (S, D_in)        f32   input sequence
      w_ref     (L, Dp+H, 4H)    bf16  per layer: rows [0:d_in]=W_ih^T, [Dp:Dp+H]=W_hh^T
      b_ref     (L, 1, 4H)       f32   pre-summed b_ih + b_hh
      head_ref  (H+1, O)         f32   rows [0:H]=W_lin^T, row [H]=b_lin
      preds_ref (1, O)           f32   output
      hlast_ref (1, H)           f32   output (== lstm_out[:, -1, :])
      h_scratch (S, H)           f32   per-timestep h of the current (non-last) layer

    PyTorch gate order along the 4H axis: i, f, g, o.
    """
    H, S, Dp = hidden, seq_len, d_pad
    assert num_layers >= 1

    layer_in_bf = x_ref[...].astype(jnp.bfloat16)                  # (S, d_in0) bf16
    for l in range(num_layers):
        d_in = d_in0 if l == 0 else H
        w_ih_t = w_ref[l, 0:d_in, :]                               # (d_in, 4H) bf16
        w_hh_t = w_ref[l, Dp:Dp + H, :]                            # (H, 4H)    bf16 (loop-invariant)
        b = b_ref[l]                                               # (1, 4H)    f32

        # Hoisted input projection: one bf16 matmul per layer, off the serial
        # critical path; accumulate + bias in f32.
        gates_x = jnp.dot(layer_in_bf, w_ih_t,
                          preferred_element_type=jnp.float32) + b  # (S, 4H) f32

        h = jnp.zeros((1, H), jnp.float32)
        c = jnp.zeros((1, H), jnp.float32)
        last_layer = (l == num_layers - 1)
        for t in range(S):                 # fully unrolled; h/c live in vregs
            gates = gates_x[t:t + 1, :] + jnp.dot(
                h.astype(jnp.bfloat16), w_hh_t,
                preferred_element_type=jnp.float32)                # (1, 4H) f32
            # Two full-vreg EUP ops (+1 tanh for c below) instead of 4 partials.
            # TODO(synk): the three non-zero-offset lane slices below lower to
            # XLU rotates on the serial chain; verify via pl.lower_as_mlir and
            # replace with explicit pltpu.roll / gate-column reorder if hot.
            sig = jax.nn.sigmoid(gates)
            th = jnp.tanh(gates)
            i_g = sig[:, 0 * H:1 * H]
            f_g = sig[:, 1 * H:2 * H]
            g_g = th[:, 2 * H:3 * H]
            o_g = sig[:, 3 * H:4 * H]
            c = f_g * c + i_g * g_g                                # f32 cell math
            h = o_g * jnp.tanh(c)
            if not last_layer:
                # Row store is off the h-dependency chain (vst slot idle here).
                h_scratch[t:t + 1, :] = h
        if not last_layer:
            # Next layer's input stays on-chip: one contiguous (S, H) VMEM read.
            layer_in_bf = h_scratch[...].astype(jnp.bfloat16)

    hlast_ref[...] = h
    w_lin_bf = head_ref[0:H, :].astype(jnp.bfloat16)               # (H, O) bf16
    b_lin = head_ref[H:H + 1, :]                                   # (1, O) f32
    preds_ref[...] = (
        jnp.dot(h.astype(jnp.bfloat16), w_lin_bf,
                preferred_element_type=jnp.float32) + b_lin
    )


def _vmem_spec():
    return pl.BlockSpec(memory_space=pltpu.MemorySpace.VMEM)


# ----------------------------------------------------------------------------
# Module: parameter init + forward
# ----------------------------------------------------------------------------
def init_rnn_params(key, input_dim, hidden_size, num_layers, output_step, output_dim):
    """PyTorch-shaped init (uniform +-1/sqrt(H)).

    Parameters are stored packed & pre-transposed so the forward pass dispatches
    no extra XLA ops and the kernel takes only 4 input refs:
      lstm_w : (L, Dp+H, 4H) bf16   per layer [W_ih^T (zero-padded to Dp rows); W_hh^T]
      lstm_b : (L, 1, 4H)    f32    b_ih + b_hh
      head   : (H+1, O)      f32    [W_lin^T ; b_lin]
    """
    H = hidden_size
    Dp = max(input_dim, H)
    bound = 1.0 / np.sqrt(H)
    w_blocks, b_blocks = [], []
    for layer in range(num_layers):
        d_in = input_dim if layer == 0 else H
        key, k1, k2, k3, k4 = jax.random.split(key, 5)
        w_ih = jax.random.uniform(k1, (4 * H, d_in), jnp.float32, -bound, bound)
        w_hh = jax.random.uniform(k2, (4 * H, H), jnp.float32, -bound, bound)
        b_ih = jax.random.uniform(k3, (4 * H,), jnp.float32, -bound, bound)
        b_hh = jax.random.uniform(k4, (4 * H,), jnp.float32, -bound, bound)
        w_ih_t = jnp.zeros((Dp, 4 * H), jnp.float32).at[:d_in, :].set(jnp.transpose(w_ih))
        w_blocks.append(jnp.concatenate([w_ih_t, jnp.transpose(w_hh)], axis=0))  # (Dp+H, 4H)
        b_blocks.append((b_ih + b_hh).reshape(1, 4 * H))
    key, k1, k2 = jax.random.split(key, 3)
    O = output_step * output_dim
    w_lin = jax.random.uniform(k1, (O, H), jnp.float32, -bound, bound)
    b_lin = jax.random.uniform(k2, (O,), jnp.float32, -bound, bound)
    return {
        "lstm_w": jnp.stack(w_blocks).astype(jnp.bfloat16),        # (L, Dp+H, 4H) bf16
        "lstm_b": jnp.stack(b_blocks),                             # (L, 1, 4H)    f32
        "head": jnp.concatenate([jnp.transpose(w_lin),
                                 b_lin.reshape(1, O)], axis=0),    # (H+1, O)      f32
    }


@functools.partial(jax.jit, static_argnames=("output_step", "output_dim"))
def rnn_forward(params, input_seq, *, output_step, output_dim):
    """input_seq: (1, S, D_in) -> (predictions (output_step, output_dim), x_pre (H, 1))."""
    assert input_seq.shape[0] == 1, "PyTorch forward's .view() implies batch size 1"
    x = input_seq[0]
    if x.dtype != jnp.float32:                                     # no-op for f32 callers
        x = x.astype(jnp.float32)
    S, d_in0 = x.shape
    w_pack = params["lstm_w"]
    num_layers = w_pack.shape[0]
    H = w_pack.shape[2] // 4
    Dp = w_pack.shape[1] - H
    O = params["head"].shape[1]

    preds, h_last = pl.pallas_call(
        functools.partial(_fused_rnn_kernel, num_layers, H, S, d_in0, Dp),
        out_shape=(jax.ShapeDtypeStruct((1, O), jnp.float32),
                   jax.ShapeDtypeStruct((1, H), jnp.float32)),
        in_specs=[_vmem_spec()] * 4,
        out_specs=(_vmem_spec(), _vmem_spec()),
        scratch_shapes=[pltpu.VMEM((S, H), jnp.float32)],
    )(x, w_pack, params["lstm_b"], params["head"])

    x_pre = h_last.reshape(-1, 1)                                  # == lstm_out[:, -1, :].view(H, 1)
    return preds.reshape(output_step, output_dim), x_pre


# ----------------------------------------------------------------------------
# Pure-numpy reference (emulates the kernel's bf16 matmul-operand rounding)
# ----------------------------------------------------------------------------
def _ref_forward(params, input_seq, output_step, output_dim):
    bf16 = jnp.bfloat16
    def rnd(a):  # round-to-nearest-even bf16, back to f32 (matches in-kernel casts)
        return np.asarray(a).astype(bf16).astype(np.float32)

    x = np.asarray(input_seq[0], dtype=np.float32)
    w_pack = np.asarray(params["lstm_w"]).astype(np.float32)       # bf16 values, exact in f32
    b_pack = np.asarray(params["lstm_b"]).astype(np.float32)
    head = np.asarray(params["head"]).astype(np.float32)
    L, DpH, H4 = w_pack.shape
    H = H4 // 4
    Dp = DpH - H

    layer_in = x
    for l in range(L):
        d_in = x.shape[1] if l == 0 else H
        w_ih_t = w_pack[l, 0:d_in, :]
        w_hh_t = w_pack[l, Dp:Dp + H, :]
        b = b_pack[l, 0]
        gx = rnd(layer_in) @ w_ih_t + b
        h = np.zeros((H,), np.float32)
        c = np.zeros((H,), np.float32)
        outs = []
        for t in range(layer_in.shape[0]):
            gates = gx[t] + rnd(h) @ w_hh_t
            i = 1.0 / (1.0 + np.exp(-gates[0 * H:1 * H]))
            f = 1.0 / (1.0 + np.exp(-gates[1 * H:2 * H]))
            g = np.tanh(gates[2 * H:3 * H])
            o = 1.0 / (1.0 + np.exp(-gates[3 * H:4 * H]))
            c = f * c + i * g
            h = o * np.tanh(c)
            outs.append(h)
        layer_in = np.stack(outs, axis=0)
    h_last = layer_in[-1]
    preds = rnd(h_last) @ rnd(head[0:H, :]) + head[H, :]
    return preds.reshape(output_step, output_dim), h_last.reshape(-1, 1)


# ----------------------------------------------------------------------------
if __name__ == "__main__":
    # Small shapes implied by the module (batch=1 is forced by .view in forward).
    input_dim = 8
    input_step = 8          # sequence length
    hidden_layer_size = 32
    num_layers = 2
    output_step = 4
    output_dim = 2

    key = jax.random.PRNGKey(0)
    key, pkey, xkey = jax.random.split(key, 3)
    params = init_rnn_params(pkey, input_dim, hidden_layer_size, num_layers,
                             output_step, output_dim)
    input_seq = jax.random.normal(xkey, (1, input_step, input_dim), jnp.float32)

    preds, x_pre = rnn_forward(params, input_seq,
                               output_step=output_step, output_dim=output_dim)
    preds = jax.block_until_ready(preds)
    x_pre = jax.block_until_ready(x_pre)

    assert preds.shape == (output_step, output_dim)
    assert x_pre.shape == (hidden_layer_size, 1)

    ref_preds, ref_xpre = _ref_forward(params, np.asarray(input_seq), output_step, output_dim)
    np.testing.assert_allclose(np.asarray(preds), ref_preds, rtol=2e-3, atol=2e-4)
    np.testing.assert_allclose(np.asarray(x_pre), ref_xpre, rtol=2e-3, atol=2e-4)

    print("KERNEL_OK")
</pallas_src>

<mosaic_0001>
module attributes {stable_mosaic.version = 11 : i64} {
  func.func @_fused_rnn_kernel(%arg0: memref<8x8xf32, #tpu.memory_space<vmem>>, %arg1: memref<2x64x128xbf16, #tpu.memory_space<vmem>>, %arg2: memref<2x1x128xf32, #tpu.memory_space<vmem>>, %arg3: memref<33x8xf32, #tpu.memory_space<vmem>>, %arg4: memref<1x8xf32, #tpu.memory_space<vmem>>, %arg5: memref<1x32xf32, #tpu.memory_space<vmem>>, %arg6: memref<8x32xf32, #tpu.memory_space<vmem>>) attributes {dimension_semantics = [], scalar_prefetch = 0 : i64, scratch_operands = 1 : i64, tpu.core_type = #tpu.core_type<tc>} {
    %c0 = arith.constant 0 : index
    %c0_0 = arith.constant 0 : index
    %0 = vector.load %arg0[%c0, %c0_0] : memref<8x8xf32, #tpu.memory_space<vmem>>, vector<8x8xf32>
    %1 = arith.truncf %0 : vector<8x8xf32> to vector<8x8xbf16>
    %c0_1 = arith.constant 0 : index
    %c0_2 = arith.constant 0 : index
    %c0_3 = arith.constant 0 : index
    %2 = vector.load %arg1[%c0_1, %c0_2, %c0_3] : memref<2x64x128xbf16, #tpu.memory_space<vmem>>, vector<1x8x128xbf16>
    %3 = vector.shape_cast %2 : vector<1x8x128xbf16> to vector<8x128xbf16>
    %c0_4 = arith.constant 0 : index
    %c32 = arith.constant 32 : index
    %c0_5 = arith.constant 0 : index
    %4 = vector.load %arg1[%c0_4, %c32, %c0_5] : memref<2x64x128xbf16, #tpu.memory_space<vmem>>, vector<1x32x128xbf16>
    %5 = vector.shape_cast %4 : vector<1x32x128xbf16> to vector<32x128xbf16>
    %c0_6 = arith.constant 0 : index
    %c0_7 = arith.constant 0 : index
    %c0_8 = arith.constant 0 : index
    %6 = vector.load %arg2[%c0_6, %c0_7, %c0_8] : memref<2x1x128xf32, #tpu.memory_space<vmem>>, vector<1x1x128xf32>
    %7 = vector.shape_cast %6 : vector<1x1x128xf32> to vector<1x128xf32>
    %cst = arith.constant dense<0.000000e+00> : vector<8x128xf32>
    %8 = tpu.matmul %1, %3, %cst {dimension_numbers = #tpu.dot_dimension_numbers<[1], [0], [0], [1], [0, 0, 1, 1], [], []>} : vector<8x8xbf16>, vector<8x128xbf16>, vector<8x128xf32> -> vector<8x128xf32>
    %9 = vector.broadcast %7 : vector<1x128xf32> to vector<8x128xf32>
    %10 = arith.addf %8, %9 : vector<8x128xf32>
    %cst_9 = arith.constant 0.000000e+00 : f32
    %11 = vector.broadcast %cst_9 : f32 to vector<1x32xf32>
    %cst_10 = arith.constant 0.000000e+00 : f32
    %12 = vector.broadcast %cst_10 : f32 to vector<1x32xf32>
    %13 = vector.extract_strided_slice %10 {offsets = [0, 0], sizes = [1, 128], strides = [1, 1]} : vector<8x128xf32> to vector<1x128xf32>
    %14 = arith.truncf %11 : vector<1x32xf32> to vector<1x32xbf16>
    %cst_11 = arith.constant dense<0.000000e+00> : vector<1x128xf32>
    %15 = tpu.matmul %14, %5, %cst_11 {dimension_numbers = #tpu.dot_dimension_numbers<[1], [0], [0], [1], [0, 0, 1, 1], [], []>} : vector<1x32xbf16>, vector<32x128xbf16>, vector<1x128xf32> -> vector<1x128xf32>
    %16 = arith.addf %13, %15 : vector<1x128xf32>
    %17 = arith.negf %16 : vector<1x128xf32>
    %18 = math.exp %17 : vector<1x128xf32>
    %cst_12 = arith.constant 1.000000e+00 : f32
    %19 = vector.broadcast %cst_12 : f32 to vector<1x128xf32>
    %20 = arith.addf %19, %18 : vector<1x128xf32>
    %21 = arith.divf %19, %20 : vector<1x128xf32>
    %22 = math.tanh %16 : vector<1x128xf32>
    %23 = vector.extract_strided_slice %21 {offsets = [0, 0], sizes = [1, 32], strides = [1, 1]} : vector<1x128xf32> to vector<1x32xf32>
    %24 = vector.extract_strided_slice %21 {offsets = [0, 32], sizes = [1, 32], strides = [1, 1]} : vector<1x128xf32> to vector<1x32xf32>
    %25 = vector.extract_strided_slice %22 {offsets = [0, 64], sizes = [1, 32], strides = [1, 1]} : vector<1x128xf32> to vector<1x32xf32>
    %26 = vector.extract_strided_slice %21 {offsets = [0, 96], sizes = [1, 32], strides = [1, 1]} : vector<1x128xf32> to vector<1x32xf32>
    %27 = arith.mulf %24, %12 : vector<1x32xf32>
    %28 = arith.mulf %23, %25 : vector<1x32xf32>
    %29 = arith.addf %27, %28 : vector<1x32xf32>
    %30 = math.tanh %29 : vector<1x32xf32>
    %31 = arith.mulf %26, %30 : vector<1x32xf32>
    %c0_13 = arith.constant 0 : index
    %c0_14 = arith.constant 0 : index
    %32 = vector.load %arg6[%c0_13, %c0_14] : memref<8x32xf32, #tpu.memory_space<vmem>>, vector<1x32xf32>
    tpu.vector_store %arg6[%c0_13, %c0_14], %31 {strides = array<i32>} : memref<8x32xf32, #tpu.memory_space<vmem>>, vector<1x32xf32>,
    %33 = vector.extract_strided_slice %10 {offsets = [1, 0], sizes = [1, 128], strides = [1, 1]} : vector<8x128xf32> to vector<1x128xf32>
    %34 = arith.truncf %31 : vector<1x32xf32> to vector<1x32xbf16>
    %cst_15 = arith.constant dense<0.000000e+00> : vector<1x128xf32>
    %35 = tpu.matmul %34, %5, %cst_15 {dimension_numbers = #tpu.dot_dimension_numbers<[1], [0], [0], [1], [0, 0, 1, 1], [], []>} : vector<1x32xbf16>, vector<32x128xbf16>, vector<1x128xf32> -> vector<1x128xf32>
    %36 = arith.addf %33, %35 : vector<1x128xf32>
    %37 = arith.negf %36 : vector<1x128xf32>
    %38 = math.exp %37 : vector<1x128xf32>
    %cst_16 = arith.constant 1.000000e+00 : f32
    %39 = vector.broadcast %cst_16 : f32 to vector<1x128xf32>
    %40 = arith.addf %39, %38 : vector<1x128xf32>
    %41 = arith.divf %39, %40 : vector<1x128xf32>
    %42 = math.tanh %36 : vector<1x128xf32>
    %43 = vector.extract_strided_slice %41 {offsets = [0, 0], sizes = [1, 32], strides = [1, 1]} : vector<1x128xf32> to vector<1x32xf32>
    %44 = vector.extract_strided_slice %41 {offsets = [0, 32], sizes = [1, 32], strides = [1, 1]} : vector<1x128xf32> to vector<1x32xf32>
    %45 = vector.extract_strided_slice %42 {offsets = [0, 64], sizes = [1, 32], strides = [1, 1]} : vector<1x128xf32> to vector<1x32xf32>
    %46 = vector.extract_strided_slice %41 {offsets = [0, 96], sizes = [1, 32], strides = [1, 1]} : vector<1x128xf32> to vector<1x32xf32>
    %47 = arith.mulf %44, %29 : vector<1x32xf32>
    %48 = arith.mulf %43, %45 : vector<1x32xf32>
    %49 = arith.addf %47, %48 : vector<1x32xf32>
    %50 = math.tanh %49 : vector<1x32xf32>
    %51 = arith.mulf %46, %50 : vector<1x32xf32>
    %c1 = arith.constant 1 : index
    %c0_17 = arith.constant 0 : index
    %52 = vector.load %arg6[%c1, %c0_17] : memref<8x32xf32, #tpu.memory_space<vmem>>, vector<1x32xf32>
    tpu.vector_store %arg6[%c1, %c0_17], %51 {strides = array<i32>} : memref<8x32xf32, #tpu.memory_space<vmem>>, vector<1x32xf32>,
    %53 = vector.extract_strided_slice %10 {offsets = [2, 0], sizes = [1, 128], strides = [1, 1]} : vector<8x128xf32> to vector<1x128xf32>
    %54 = arith.truncf %51 : vector<1x32xf32> to vector<1x32xbf16>
    %cst_18 = arith.constant dense<0.000000e+00> : vector<1x128xf32>
    %55 = tpu.matmul %54, %5, %cst_18 {dimension_numbers = #tpu.dot_dimension_numbers<[1], [0], [0], [1], [0, 0, 1, 1], [], []>} : vector<1x32xbf16>, vector<32x128xbf16>, vector<1x128xf32> -> vector<1x128xf32>
    %56 = arith.addf %53, %55 : vector<1x128xf32>
    %57 = arith.negf %56 : vector<1x128xf32>
    %58 = math.exp %57 : vector<1x128xf32>
    %cst_19 = arith.constant 1.000000e+00 : f32
    %59 = vector.broadcast %cst_19 : f32 to vector<1x128xf32>
    %60 = arith.addf %59, %58 : vector<1x128xf32>
    %61 = arith.divf %59, %60 : vector<1x128xf32>
    %62 = math.tanh %56 : vector<1x128xf32>
    %63 = vector.extract_strided_slice %61 {offsets = [0, 0], sizes = [1, 32], strides = [1, 1]} : vector<1x128xf32> to vector<1x32xf32>
    %64 = vector.extract_strided_slice %61 {offsets = [0, 32], sizes = [1, 32], strides = [1, 1]} : vector<1x128xf32> to vector<1x32xf32>
    %65 = vector.extract_strided_slice %62 {offsets = [0, 64], sizes = [1, 32], strides = [1, 1]} : vector<1x128xf32> to vector<1x32xf32>
    %66 = vector.extract_strided_slice %61 {offsets = [0, 96], sizes = [1, 32], strides = [1, 1]} : vector<1x128xf32> to vector<1x32xf32>
    %67 = arith.mulf %64, %49 : vector<1x32xf32>
    %68 = arith.mulf %63, %65 : vector<1x32xf32>
    %69 = arith.addf %67, %68 : vector<1x32xf32>
    %70 = math.tanh %69 : vector<1x32xf32>
    %71 = arith.mulf %66, %70 : vector<1x32xf32>
    %c2 = arith.constant 2 : index
    %c0_20 = arith.constant 0 : index
    %72 = vector.load %arg6[%c2, %c0_20] : memref<8x32xf32, #tpu.memory_space<vmem>>, vector<1x32xf32>
    tpu.vector_store %arg6[%c2, %c0_20], %71 {strides = array<i32>} : memref<8x32xf32, #tpu.memory_space<vmem>>, vector<1x32xf32>,
    %73 = vector.extract_strided_slice %10 {offsets = [3, 0], sizes = [1, 128], strides = [1, 1]} : vector<8x128xf32> to vector<1x128xf32>
    %74 = arith.truncf %71 : vector<1x32xf32> to vector<1x32xbf16>
    %cst_21 = arith.constant dense<0.000000e+00> : vector<1x128xf32>
    %75 = tpu.matmul %74, %5, %cst_21 {dimension_numbers = #tpu.dot_dimension_numbers<[1], [0], [0], [1], [0, 0, 1, 1], [], []>} : vector<1x32xbf16>, vector<32x128xbf16>, vector<1x128xf32> -> vector<1x128xf32>
    %76 = arith.addf %73, %75 : vector<1x128xf32>
    %77 = arith.negf %76 : vector<1x128xf32>
    %78 = math.exp %77 : vector<1x128xf32>
    %cst_22 = arith.constant 1.000000e+00 : f32
    %79 = vector.broadcast %cst_22 : f32 to vector<1x128xf32>
    %80 = arith.addf %79, %78 : vector<1x128xf32>
    %81 = arith.divf %79, %80 : vector<1x128xf32>
    %82 = math.tanh %76 : vector<1x128xf32>
    %83 = vector.extract_strided_slice %81 {offsets = [0, 0], sizes = [1, 32], strides = [1, 1]} : vector<1x128xf32> to vector<1x32xf32>
    %84 = vector.extract_strided_slice %81 {offsets = [0, 32], sizes = [1, 32], strides = [1, 1]} : vector<1x128xf32> to vector<1x32xf32>
    %85 = vector.extract_strided_slice %82 {offsets = [0, 64], sizes = [1, 32], strides = [1, 1]} : vector<1x128xf32> to vector<1x32xf32>
    %86 = vector.extract_strided_slice %81 {offsets = [0, 96], sizes = [1, 32], strides = [1, 1]} : vector<1x128xf32> to vector<1x32xf32>
    %87 = arith.mulf %84, %69 : vector<1x32xf32>
    %88 = arith.mulf %83, %85 : vector<1x32xf32>
    %89 = arith.addf %87, %88 : vector<1x32xf32>
    %90 = math.tanh %89 : vector<1x32xf32>
    %91 = arith.mulf %86, %90 : vector<1x32xf32>
    %c3 = arith.constant 3 : index
    %c0_23 = arith.constant 0 : index
    %92 = vector.load %arg6[%c3, %c0_23] : memref<8x32xf32, #tpu.memory_space<vmem>>, vector<1x32xf32>
    tpu.vector_store %arg6[%c3, %c0_23], %91 {strides = array<i32>} : memref<8x32xf32, #tpu.memory_space<vmem>>, vector<1x32xf32>,
    %93 = vector.extract_strided_slice %10 {offsets = [4, 0], sizes = [1, 128], strides = [1, 1]} : vector<8x128xf32> to vector<1x128xf32>
    %94 = arith.truncf %91 : vector<1x32xf32> to vector<1x32xbf16>
    %cst_24 = arith.constant dense<0.000000e+00> : vector<1x128xf32>
    %95 = tpu.matmul %94, %5, %cst_24 {dimension_numbers = #tpu.dot_dimension_numbers<[1], [0], [0], [1], [0, 0, 1, 1], [], []>} : vector<1x32xbf16>, vector<32x128xbf16>, vector<1x128xf32> -> vector<1x128xf32>
    %96 = arith.addf %93, %95 : vector<1x128xf32>
    %97 = arith.negf %96 : vector<1x128xf32>
    %98 = math.exp %97 : vector<1x128xf32>
    %cst_25 = arith.constant 1.000000e+00 : f32
    %99 = vector.broadcast %cst_25 : f32 to vector<1x128xf32>
    %100 = arith.addf %99, %98 : vector<1x128xf32>
    %101 = arith.divf %99, %100 : vector<1x128xf32>
    %102 = math.tanh %96 : vector<1x128xf32>
    %103 = vector.extract_strided_slice %101 {offsets = [0, 0], sizes = [1, 32], strides = [1, 1]} : vector<1x128xf32> to vector<1x32xf32>
    %104 = vector.extract_strided_slice %101 {offsets = [0, 32], sizes = [1, 32], strides = [1, 1]} : vector<1x128xf32> to vector<1x32xf32>
    %105 = vector.extract_strided_slice %102 {offsets = [0, 64], sizes = [1, 32], strides = [1, 1]} : vector<1x128xf32> to vector<1x32xf32>
    %106 = vector.extract_strided_slice %101 {offsets = [0, 96], sizes = [1, 32], strides = [1, 1]} : vector<1x128xf32> to vector<1x32xf32>
    %107 = arith.mulf %104, %89 : vector<1x32xf32>
    %108 = arith.mulf %103, %105 : vector<1x32xf32>
    %109 = arith.addf %107, %108 : vector<1x32xf32>
    %110 = math.tanh %109 : vector<1x32xf32>
    %111 = arith.mulf %106, %110 : vector<1x32xf32>
    %c4 = arith.constant 4 : index
    %c0_26 = arith.constant 0 : index
    %112 = vector.load %arg6[%c4, %c0_26] : memref<8x32xf32, #tpu.memory_space<vmem>>, vector<1x32xf32>
    tpu.vector_store %arg6[%c4, %c0_26], %111 {strides = array<i32>} : memref<8x32xf32, #tpu.memory_space<vmem>>, vector<1x32xf32>,
    %113 = vector.extract_strided_slice %10 {offsets = [5, 0], sizes = [1, 128], strides = [1, 1]} : vector<8x128xf32> to vector<1x128xf32>
    %114 = arith.truncf %111 : vector<1x32xf32> to vector<1x32xbf16>
    %cst_27 = arith.constant dense<0.000000e+00> : vector<1x128xf32>
    %115 = tpu.matmul %114, %5, %cst_27 {dimension_numbers = #tpu.dot_dimension_numbers<[1], [0], [0], [1], [0, 0, 1, 1], [], []>} : vector<1x32xbf16>, vector<32x128xbf16>, vector<1x128xf32> -> vector<1x128xf32>
    %116 = arith.addf %113, %115 : vector<1x128xf32>
    %117 = arith.negf %116 : vector<1x128xf32>
    %118 = math.exp %117 : vector<1x128xf32>
    %cst_28 = arith.constant 1.000000e+00 : f32
    %119 = vector.broadcast %cst_28 : f32 to vector<1x128xf32>
    %120 = arith.addf %119, %118 : vector<1x128xf32>
    %121 = arith.divf %119, %120 : vector<1x128xf32>
    %122 = math.tanh %116 : vector<1x128xf32>
    %123 = vector.extract_strided_slice %121 {offsets = [0, 0], sizes = [1, 32], strides = [1, 1]} : vector<1x128xf32> to vector<1x32xf32>
    %124 = vector.extract_strided_slice %121 {offsets = [0, 32], sizes = [1, 32], strides = [1, 1]} : vector<1x128xf32> to vector<1x32xf32>
    %125 = vector.extract_strided_slice %122 {offsets = [0, 64], sizes = [1, 32], strides = [1, 1]} : vector<1x128xf32> to vector<1x32xf32>
    %126 = vector.extract_strided_slice %121 {offsets = [0, 96], sizes = [1, 32], strides = [1, 1]} : vector<1x128xf32> to vector<1x32xf32>
    %127 = arith.mulf %124, %109 : vector<1x32xf32>
    %128 = arith.mulf %123, %125 : vector<1x32xf32>
    %129 = arith.addf %127, %128 : vector<1x32xf32>
    %130 = math.tanh %129 : vector<1x32xf32>
    %131 = arith.mulf %126, %130 : vector<1x32xf32>
    %c5 = arith.constant 5 : index
    %c0_29 = arith.constant 0 : index
    %132 = vector.load %arg6[%c5, %c0_29] : memref<8x32xf32, #tpu.memory_space<vmem>>, vector<1x32xf32>
    tpu.vector_store %arg6[%c5, %c0_29], %131 {strides = array<i32>} : memref<8x32xf32, #tpu.memory_space<vmem>>, vector<1x32xf32>,
    %133 = vector.extract_strided_slice %10 {offsets = [6, 0], sizes = [1, 128], strides = [1, 1]} : vector<8x128xf32> to vector<1x128xf32>
    %134 = arith.truncf %131 : vector<1x32xf32> to vector<1x32xbf16>
    %cst_30 = arith.constant dense<0.000000e+00> : vector<1x128xf32>
    %135 = tpu.matmul %134, %5, %cst_30 {dimension_numbers = #tpu.dot_dimension_numbers<[1], [0], [0], [1], [0, 0, 1, 1], [], []>} : vector<1x32xbf16>, vector<32x128xbf16>, vector<1x128xf32> -> vector<1x128xf32>
    %136 = arith.addf %133, %135 : vector<1x128xf32>
    %137 = arith.negf %136 : vector<1x128xf32>
    %138 = math.exp %137 : vector<1x128xf32>
    %cst_31 = arith.constant 1.000000e+00 : f32
    %139 = vector.broadcast %cst_31 : f32 to vector<1x128xf32>
    %140 = arith.addf %139, %138 : vector<1x128xf32>
    %141 = arith.divf %139, %140 : vector<1x128xf32>
    %142 = math.tanh %136 : vector<1x128xf32>
    %143 = vector.extract_strided_slice %141 {offsets = [0, 0], sizes = [1, 32], strides = [1, 1]} : vector<1x128xf32> to vector<1x32xf32>
    %144 = vector.extract_strided_slice %141 {offsets = [0, 32], sizes = [1, 32], strides = [1, 1]} : vector<1x128xf32> to vector<1x32xf32>
    %145 = vector.extract_strided_slice %142 {offsets = [0, 64], sizes = [1, 32], strides = [1, 1]} : vector<1x128xf32> to vector<1x32xf32>
    %146 = vector.extract_strided_slice %141 {offsets = [0, 96], sizes = [1, 32], strides = [1, 1]} : vector<1x128xf32> to vector<1x32xf32>
    %147 = arith.mulf %144, %129 : vector<1x32xf32>
    %148 = arith.mulf %143, %145 : vector<1x32xf32>
    %149 = arith.addf %147, %148 : vector<1x32xf32>
    %150 = math.tanh %149 : vector<1x32xf32>
    %151 = arith.mulf %146, %150 : vector<1x32xf32>
    %c6 = arith.constant 6 : index
    %c0_32 = arith.constant 0 : index
    %152 = vector.load %arg6[%c6, %c0_32] : memref<8x32xf32, #tpu.memory_space<vmem>>, vector<1x32xf32>
    tpu.vector_store %arg6[%c6, %c0_32], %151 {strides = array<i32>} : memref<8x32xf32, #tpu.memory_space<vmem>>, vector<1x32xf32>,
    %153 = vector.extract_strided_slice %10 {offsets = [7, 0], sizes = [1, 128], strides = [1, 1]} : vector<8x128xf32> to vector<1x128xf32>
    %154 = arith.truncf %151 : vector<1x32xf32> to vector<1x32xbf16>
    %cst_33 = arith.constant dense<0.000000e+00> : vector<1x128xf32>
    %155 = tpu.matmul %154, %5, %cst_33 {dimension_numbers = #tpu.dot_dimension_numbers<[1], [0], [0], [1], [0, 0, 1, 1], [], []>} : vector<1x32xbf16>, vector<32x128xbf16>, vector<1x128xf32> -> vector<1x128xf32>
    %156 = arith.addf %153, %155 : vector<1x128xf32>
    %157 = arith.negf %156 : vector<1x128xf32>
    %158 = math.exp %157 : vector<1x128xf32>
    %cst_34 = arith.constant 1.000000e+00 : f32
    %159 = vector.broadcast %cst_34 : f32 to vector<1x128xf32>
    %160 = arith.addf %159, %158 : vector<1x128xf32>
    %161 = arith.divf %159, %160 : vector<1x128xf32>
    %162 = math.tanh %156 : vector<1x128xf32>
    %163 = vector.extract_strided_slice %161 {offsets = [0, 0], sizes = [1, 32], strides = [1, 1]} : vector<1x128xf32> to vector<1x32xf32>
    %164 = vector.extract_strided_slice %161 {offsets = [0, 32], sizes = [1, 32], strides = [1, 1]} : vector<1x128xf32> to vector<1x32xf32>
    %165 = vector.extract_strided_slice %162 {offsets = [0, 64], sizes = [1, 32], strides = [1, 1]} : vector<1x128xf32> to vector<1x32xf32>
    %166 = vector.extract_strided_slice %161 {offsets = [0, 96], sizes = [1, 32], strides = [1, 1]} : vector<1x128xf32> to vector<1x32xf32>
    %167 = arith.mulf %164, %149 : vector<1x32xf32>
    %168 = arith.mulf %163, %165 : vector<1x32xf32>
    %169 = arith.addf %167, %168 : vector<1x32xf32>
    %170 = math.tanh %169 : vector<1x32xf32>
    %171 = arith.mulf %166, %170 : vector<1x32xf32>
    %c7 = arith.constant 7 : index
    %c0_35 = arith.constant 0 : index
    %172 = vector.load %arg6[%c7, %c0_35] : memref<8x32xf32, #tpu.memory_space<vmem>>, vector<1x32xf32>
    tpu.vector_store %arg6[%c7, %c0_35], %171 {strides = array<i32>} : memref<8x32xf32, #tpu.memory_space<vmem>>, vector<1x32xf32>,
    %c0_36 = arith.constant 0 : index
    %c0_37 = arith.constant 0 : index
    %173 = vector.load %arg6[%c0_36, %c0_37] : memref<8x32xf32, #tpu.memory_space<vmem>>, vector<8x32xf32>
    %174 = arith.truncf %173 : vector<8x32xf32> to vector<8x32xbf16>
    %c1_38 = arith.constant 1 : index
    %c0_39 = arith.constant 0 : index
    %c0_40 = arith.constant 0 : index
    %175 = vector.load %arg1[%c1_38, %c0_39, %c0_40] : memref<2x64x128xbf16, #tpu.memory_space<vmem>>, vector<1x32x128xbf16>
    %176 = vector.shape_cast %175 : vector<1x32x128xbf16> to vector<32x128xbf16>
    %c1_41 = arith.constant 1 : index
    %c32_42 = arith.constant 32 : index
    %c0_43 = arith.constant 0 : index
    %177 = vector.load %arg1[%c1_41, %c32_42, %c0_43] : memref<2x64x128xbf16, #tpu.memory_space<vmem>>, vector<1x32x128xbf16>
    %178 = vector.shape_cast %177 : vector<1x32x128xbf16> to vector<32x128xbf16>
    %c1_44 = arith.constant 1 : index
    %c0_45 = arith.constant 0 : index
    %c0_46 = arith.constant 0 : index
    %179 = vector.load %arg2[%c1_44, %c0_45, %c0_46] : memref<2x1x128xf32, #tpu.memory_space<vmem>>, vector<1x1x128xf32>
    %180 = vector.shape_cast %179 : vector<1x1x128xf32> to vector<1x128xf32>
    %cst_47 = arith.constant dense<0.000000e+00> : vector<8x128xf32>
    %181 = tpu.matmul %174, %176, %cst_47 {dimension_numbers = #tpu.dot_dimension_numbers<[1], [0], [0], [1], [0, 0, 1, 1], [], []>} : vector<8x32xbf16>, vector<32x128xbf16>, vector<8x128xf32> -> vector<8x128xf32>
    %182 = vector.broadcast %180 : vector<1x128xf32> to vector<8x128xf32>
    %183 = arith.addf %181, %182 : vector<8x128xf32>
    %cst_48 = arith.constant 0.000000e+00 : f32
    %184 = vector.broadcast %cst_48 : f32 to vector<1x32xf32>
    %cst_49 = arith.constant 0.000000e+00 : f32
    %185 = vector.broadcast %cst_49 : f32 to vector<1x32xf32>
    %186 = vector.extract_strided_slice %183 {offsets = [0, 0], sizes = [1, 128], strides = [1, 1]} : vector<8x128xf32> to vector<1x128xf32>
    %187 = arith.truncf %184 : vector<1x32xf32> to vector<1x32xbf16>
    %cst_50 = arith.constant dense<0.000000e+00> : vector<1x128xf32>
    %188 = tpu.matmul %187, %178, %cst_50 {dimension_numbers = #tpu.dot_dimension_numbers<[1], [0], [0], [1], [0, 0, 1, 1], [], []>} : vector<1x32xbf16>, vector<32x128xbf16>, vector<1x128xf32> -> vector<1x128xf32>
    %189 = arith.addf %186, %188 : vector<1x128xf32>
    %190 = arith.negf %189 : vector<1x128xf32>
    %191 = math.exp %190 : vector<1x128xf32>
    %cst_51 = arith.constant 1.000000e+00 : f32
    %192 = vector.broadcast %cst_51 : f32 to vector<1x128xf32>
    %193 = arith.addf %192, %191 : vector<1x128xf32>
    %194 = arith.divf %192, %193 : vector<1x128xf32>
    %195 = math.tanh %189 : vector<1x128xf32>
    %196 = vector.extract_strided_slice %194 {offsets = [0, 0], sizes = [1, 32], strides = [1, 1]} : vector<1x128xf32> to vector<1x32xf32>
    %197 = vector.extract_strided_slice %194 {offsets = [0, 32], sizes = [1, 32], strides = [1, 1]} : vector<1x128xf32> to vector<1x32xf32>
    %198 = vector.extract_strided_slice %195 {offsets = [0, 64], sizes = [1, 32], strides = [1, 1]} : vector<1x128xf32> to vector<1x32xf32>
    %199 = vector.extract_strided_slice %194 {offsets = [0, 96], sizes = [1, 32], strides = [1, 1]} : vector<1x128xf32> to vector<1x32xf32>
    %200 = arith.mulf %197, %185 : vector<1x32xf32>
    %201 = arith.mulf %196, %198 : vector<1x32xf32>
    %202 = arith.addf %200, %201 : vector<1x32xf32>
    %203 = math.tanh %202 : vector<1x32xf32>
    %204 = arith.mulf %199, %203 : vector<1x32xf32>
    %205 = vector.extract_strided_slice %183 {offsets = [1, 0], sizes = [1, 128], strides = [1, 1]} : vector<8x128xf32> to vector<1x128xf32>
    %206 = arith.truncf %204 : vector<1x32xf32> to vector<1x32xbf16>
    %cst_52 = arith.constant dense<0.000000e+00> : vector<1x128xf32>
    %207 = tpu.matmul %206, %178, %cst_52 {dimension_numbers = #tpu.dot_dimension_numbers<[1], [0], [0], [1], [0, 0, 1, 1], [], []>} : vector<1x32xbf16>, vector<32x128xbf16>, vector<1x128xf32> -> vector<1x128xf32>
    %208 = arith.addf %205, %207 : vector<1x128xf32>
    %209 = arith.negf %208 : vector<1x128xf32>
    %210 = math.exp %209 : vector<1x128xf32>
    %cst_53 = arith.constant 1.000000e+00 : f32
    %211 = vector.broadcast %cst_53 : f32 to vector<1x128xf32>
    %212 = arith.addf %211, %210 : vector<1x128xf32>
    %213 = arith.divf %211, %212 : vector<1x128xf32>
    %214 = math.tanh %208 : vector<1x128xf32>
    %215 = vector.extract_strided_slice %213 {offsets = [0, 0], sizes = [1, 32], strides = [1, 1]} : vector<1x128xf32> to vector<1x32xf32>
    %216 = vector.extract_strided_slice %213 {offsets = [0, 32], sizes = [1, 32], strides = [1, 1]} : vector<1x128xf32> to vector<1x32xf32>
    %217 = vector.extract_strided_slice %214 {offsets = [0, 64], sizes = [1, 32], strides = [1, 1]} : vector<1x128xf32> to vector<1x32xf32>
    %218 = vector.extract_strided_slice %213 {offsets = [0, 96], sizes = [1, 32], strides = [1, 1]} : vector<1x128xf32> to vector<1x32xf32>
    %219 = arith.mulf %216, %202 : vector<1x32xf32>
    %220 = arith.mulf %215, %217 : vector<1x32xf32>
    %221 = arith.addf %219, %220 : vector<1x32xf32>
    %222 = math.tanh %221 : vector<1x32xf32>
    %223 = arith.mulf %218, %222 : vector<1x32xf32>
    %224 = vector.extract_strided_slice %183 {offsets = [2, 0], sizes = [1, 128], strides = [1, 1]} : vector<8x128xf32> to vector<1x128xf32>
    %225 = arith.truncf %223 : vector<1x32xf32> to vector<1x32xbf16>
    %cst_54 = arith.constant dense<0.000000e+00> : vector<1x128xf32>
    %226 = tpu.matmul %225, %178, %cst_54 {dimension_numbers = #tpu.dot_dimension_numbers<[1], [0], [0], [1], [0, 0, 1, 1], [], []>} : vector<1x32xbf16>, vector<32x128xbf16>, vector<1x128xf32> -> vector<1x128xf32>
    %227 = arith.addf %224, %226 : vector<1x128xf32>
    %228 = arith.negf %227 : vector<1x128xf32>
    %229 = math.exp %228 : vector<1x128xf32>
    %cst_55 = arith.constant 1.000000e+00 : f32
    %230 = vector.broadcast %cst_55 : f32 to vector<1x128xf32>
    %231 = arith.addf %230, %229 : vector<1x128xf32>
    %232 = arith.divf %230, %231 : vector<1x128xf32>
    %233 = math.tanh %227 : vector<1x128xf32>
    %234 = vector.extract_strided_slice %232 {offsets = [0, 0], sizes = [1, 32], strides = [1, 1]} : vector<1x128xf32> to vector<1x32xf32>
    %235 = vector.extract_strided_slice %232 {offsets = [0, 32], sizes = [1, 32], strides = [1, 1]} : vector<1x128xf32> to vector<1x32xf32>
    %236 = vector.extract_strided_slice %233 {offsets = [0, 64], sizes = [1, 32], strides = [1, 1]} : vector<1x128xf32> to vector<1x32xf32>
    %237 = vector.extract_strided_slice %232 {offsets = [0, 96], sizes = [1, 32], strides = [1, 1]} : vector<1x128xf32> to vector<1x32xf32>
    %238 = arith.mulf %235, %221 : vector<1x32xf32>
    %239 = arith.mulf %234, %236 : vector<1x32xf32>
    %240 = arith.addf %238, %239 : vector<1x32xf32>
    %241 = math.tanh %240 : vector<1x32xf32>
    %242 = arith.mulf %237, %241 : vector<1x32xf32>
    %243 = vector.extract_strided_slice %183 {offsets = [3, 0], sizes = [1, 128], strides = [1, 1]} : vector<8x128xf32> to vector<1x128xf32>
    %244 = arith.truncf %242 : vector<1x32xf32> to vector<1x32xbf16>
    %cst_56 = arith.constant dense<0.000000e+00> : vector<1x128xf32>
    %245 = tpu.matmul %244, %178, %cst_56 {dimension_numbers = #tpu.dot_dimension_numbers<[1], [0], [0], [1], [0, 0, 1, 1], [], []>} : vector<1x32xbf16>, vector<32x128xbf16>, vector<1x128xf32> -> vector<1x128xf32>
    %246 = arith.addf %243, %245 : vector<1x128xf32>
    %247 = arith.negf %246 : vector<1x128xf32>
    %248 = math.exp %247 : vector<1x128xf32>
    %cst_57 = arith.constant 1.000000e+00 : f32
    %249 = vector.broadcast %cst_57 : f32 to vector<1x128xf32>
    %250 = arith.addf %249, %248 : vector<1x128xf32>
    %251 = arith.divf %249, %250 : vector<1x128xf32>
    %252 = math.tanh %246 : vector<1x128xf32>
    %253 = vector.extract_strided_slice %251 {offsets = [0, 0], sizes = [1, 32], strides = [1, 1]} : vector<1x128xf32> to vector<1x32xf32>
    %254 = vector.extract_strided_slice %251 {offsets = [0, 32], sizes = [1, 32], strides = [1, 1]} : vector<1x128xf32> to vector<1x32xf32>
    %255 = vector.extract_strided_slice %252 {offsets = [0, 64], sizes = [1, 32], strides = [1, 1]} : vector<1x128xf32> to vector<1x32xf32>
    %256 = vector.extract_strided_slice %251 {offsets = [0, 96], sizes = [1, 32], strides = [1, 1]} : vector<1x128xf32> to vector<1x32xf32>
    %257 = arith.mulf %254, %240 : vector<1x32xf32>
    %258 = arith.mulf %253, %255 : vector<1x32xf32>
    %259 = arith.addf %257, %258 : vector<1x32xf32>
    %260 = math.tanh %259 : vector<1x32xf32>
    %261 = arith.mulf %256, %260 : vector<1x32xf32>
    %262 = vector.extract_strided_slice %183 {offsets = [4, 0], sizes = [1, 128], strides = [1, 1]} : vector<8x128xf32> to vector<1x128xf32>
    %263 = arith.truncf %261 : vector<1x32xf32> to vector<1x32xbf16>
    %cst_58 = arith.constant dense<0.000000e+00> : vector<1x128xf32>
    %264 = tpu.matmul %263, %178, %cst_58 {dimension_numbers = #tpu.dot_dimension_numbers<[1], [0], [0], [1], [0, 0, 1, 1], [], []>} : vector<1x32xbf16>, vector<32x128xbf16>, vector<1x128xf32> -> vector<1x128xf32>
    %265 = arith.addf %262, %264 : vector<1x128xf32>
    %266 = arith.negf %265 : vector<1x128xf32>
    %267 = math.exp %266 : vector<1x128xf32>
    %cst_59 = arith.constant 1.000000e+00 : f32
    %268 = vector.broadcast %cst_59 : f32 to vector<1x128xf32>
    %269 = arith.addf %268, %267 : vector<1x128xf32>
    %270 = arith.divf %268, %269 : vector<1x128xf32>
    %271 = math.tanh %265 : vector<1x128xf32>
    %272 = vector.extract_strided_slice %270 {offsets = [0, 0], sizes = [1, 32], strides = [1, 1]} : vector<1x128xf32> to vector<1x32xf32>
    %273 = vector.extract_strided_slice %270 {offsets = [0, 32], sizes = [1, 32], strides = [1, 1]} : vector<1x128xf32> to vector<1x32xf32>
    %274 = vector.extract_strided_slice %271 {offsets = [0, 64], sizes = [1, 32], strides = [1, 1]} : vector<1x128xf32> to vector<1x32xf32>
    %275 = vector.extract_strided_slice %270 {offsets = [0, 96], sizes = [1, 32], strides = [1, 1]} : vector<1x128xf32> to vector<1x32xf32>
    %276 = arith.mulf %273, %259 : vector<1x32xf32>
    %277 = arith.mulf %272, %274 : vector<1x32xf32>
    %278 = arith.addf %276, %277 : vector<1x32xf32>
    %279 = math.tanh %278 : vector<1x32xf32>
    %280 = arith.mulf %275, %279 : vector<1x32xf32>
    %281 = vector.extract_strided_slice %183 {offsets = [5, 0], sizes = [1, 128], strides = [1, 1]} : vector<8x128xf32> to vector<1x128xf32>
    %282 = arith.truncf %280 : vector<1x32xf32> to vector<1x32xbf16>
    %cst_60 = arith.constant dense<0.000000e+00> : vector<1x128xf32>
    %283 = tpu.matmul %282, %178, %cst_60 {dimension_numbers = #tpu.dot_dimension_numbers<[1], [0], [0], [1], [0, 0, 1, 1], [], []>} : vector<1x32xbf16>, vector<32x128xbf16>, vector<1x128xf32> -> vector<1x128xf32>
    %284 = arith.addf %281, %283 : vector<1x128xf32>
    %285 = arith.negf %284 : vector<1x128xf32>
    %286 = math.exp %285 : vector<1x128xf32>
    %cst_61 = arith.constant 1.000000e+00 : f32
    %287 = vector.broadcast %cst_61 : f32 to vector<1x128xf32>
    %288 = arith.addf %287, %286 : vector<1x128xf32>
    %289 = arith.divf %287, %288 : vector<1x128xf32>
    %290 = math.tanh %284 : vector<1x128xf32>
    %291 = vector.extract_strided_slice %289 {offsets = [0, 0], sizes = [1, 32], strides = [1, 1]} : vector<1x128xf32> to vector<1x32xf32>
    %292 = vector.extract_strided_slice %289 {offsets = [0, 32], sizes = [1, 32], strides = [1, 1]} : vector<1x128xf32> to vector<1x32xf32>
    %293 = vector.extract_strided_slice %290 {offsets = [0, 64], sizes = [1, 32], strides = [1, 1]} : vector<1x128xf32> to vector<1x32xf32>
    %294 = vector.extract_strided_slice %289 {offsets = [0, 96], sizes = [1, 32], strides = [1, 1]} : vector<1x128xf32> to vector<1x32xf32>
    %295 = arith.mulf %292, %278 : vector<1x32xf32>
    %296 = arith.mulf %291, %293 : vector<1x32xf32>
    %297 = arith.addf %295, %296 : vector<1x32xf32>
    %298 = math.tanh %297 : vector<1x32xf32>
    %299 = arith.mulf %294, %298 : vector<1x32xf32>
    %300 = vector.extract_strided_slice %183 {offsets = [6, 0], sizes = [1, 128], strides = [1, 1]} : vector<8x128xf32> to vector<1x128xf32>
    %301 = arith.truncf %299 : vector<1x32xf32> to vector<1x32xbf16>
    %cst_62 = arith.constant dense<0.000000e+00> : vector<1x128xf32>
    %302 = tpu.matmul %301, %178, %cst_62 {dimension_numbers = #tpu.dot_dimension_numbers<[1], [0], [0], [1], [0, 0, 1, 1], [], []>} : vector<1x32xbf16>, vector<32x128xbf16>, vector<1x128xf32> -> vector<1x128xf32>
    %303 = arith.addf %300, %302 : vector<1x128xf32>
    %304 = arith.negf %303 : vector<1x128xf32>
    %305 = math.exp %304 : vector<1x128xf32>
    %cst_63 = arith.constant 1.000000e+00 : f32
    %306 = vector.broadcast %cst_63 : f32 to vector<1x128xf32>
    %307 = arith.addf %306, %305 : vector<1x128xf32>
    %308 = arith.divf %306, %307 : vector<1x128xf32>
    %309 = math.tanh %303 : vector<1x128xf32>
    %310 = vector.extract_strided_slice %308 {offsets = [0, 0], sizes = [1, 32], strides = [1, 1]} : vector<1x128xf32> to vector<1x32xf32>
    %311 = vector.extract_strided_slice %308 {offsets = [0, 32], sizes = [1, 32], strides = [1, 1]} : vector<1x128xf32> to vector<1x32xf32>
    %312 = vector.extract_strided_slice %309 {offsets = [0, 64], sizes = [1, 32], strides = [1, 1]} : vector<1x128xf32> to vector<1x32xf32>
    %313 = vector.extract_strided_slice %308 {offsets = [0, 96], sizes = [1, 32], strides = [1, 1]} : vector<1x128xf32> to vector<1x32xf32>
    %314 = arith.mulf %311, %297 : vector<1x32xf32>
    %315 = arith.mulf %310, %312 : vector<1x32xf32>
    %316 = arith.addf %314, %315 : vector<1x32xf32>
    %317 = math.tanh %316 : vector<1x32xf32>
    %318 = arith.mulf %313, %317 : vector<1x32xf32>
    %319 = vector.extract_strided_slice %183 {offsets = [7, 0], sizes = [1, 128], strides = [1, 1]} : vector<8x128xf32> to vector<1x128xf32>
    %320 = arith.truncf %318 : vector<1x32xf32> to vector<1x32xbf16>
    %cst_64 = arith.constant dense<0.000000e+00> : vector<1x128xf32>
    %321 = tpu.matmul %320, %178, %cst_64 {dimension_numbers = #tpu.dot_dimension_numbers<[1], [0], [0], [1], [0, 0, 1, 1], [], []>} : vector<1x32xbf16>, vector<32x128xbf16>, vector<1x128xf32> -> vector<1x128xf32>
    %322 = arith.addf %319, %321 : vector<1x128xf32>
    %323 = arith.negf %322 : vector<1x128xf32>
    %324 = math.exp %323 : vector<1x128xf32>
    %cst_65 = arith.constant 1.000000e+00 : f32
    %325 = vector.broadcast %cst_65 : f32 to vector<1x128xf32>
    %326 = arith.addf %325, %324 : vector<1x128xf32>
    %327 = arith.divf %325, %326 : vector<1x128xf32>
    %328 = math.tanh %322 : vector<1x128xf32>
    %329 = vector.extract_strided_slice %327 {offsets = [0, 0], sizes = [1, 32], strides = [1, 1]} : vector<1x128xf32> to vector<1x32xf32>
    %330 = vector.extract_strided_slice %327 {offsets = [0, 32], sizes = [1, 32], strides = [1, 1]} : vector<1x128xf32> to vector<1x32xf32>
    %331 = vector.extract_strided_slice %328 {offsets = [0, 64], sizes = [1, 32], strides = [1, 1]} : vector<1x128xf32> to vector<1x32xf32>
    %332 = vector.extract_strided_slice %327 {offsets = [0, 96], sizes = [1, 32], strides = [1, 1]} : vector<1x128xf32> to vector<1x32xf32>
    %333 = arith.mulf %330, %316 : vector<1x32xf32>
    %334 = arith.mulf %329, %331 : vector<1x32xf32>
    %335 = arith.addf %333, %334 : vector<1x32xf32>
    %336 = math.tanh %335 : vector<1x32xf32>
    %337 = arith.mulf %332, %336 : vector<1x32xf32>
    %c0_66 = arith.constant 0 : index
    %c0_67 = arith.constant 0 : index
    %338 = vector.load %arg5[%c0_66, %c0_67] : memref<1x32xf32, #tpu.memory_space<vmem>>, vector<1x32xf32>
    tpu.vector_store %arg5[%c0_66, %c0_67], %337 {strides = array<i32>} : memref<1x32xf32, #tpu.memory_space<vmem>>, vector<1x32xf32>,
    %c0_68 = arith.constant 0 : index
    %c0_69 = arith.constant 0 : index
    %339 = vector.load %arg3[%c0_68, %c0_69] : memref<33x8xf32, #tpu.memory_space<vmem>>, vector<32x8xf32>
    %340 = arith.truncf %339 : vector<32x8xf32> to vector<32x8xbf16>
    %c32_70 = arith.constant 32 : index
    %c0_71 = arith.constant 0 : index
    %341 = vector.load %arg3[%c32_70, %c0_71] : memref<33x8xf32, #tpu.memory_space<vmem>>, vector<1x8xf32>
    %342 = arith.truncf %337 : vector<1x32xf32> to vector<1x32xbf16>
    %cst_72 = arith.constant dense<0.000000e+00> : vector<1x8xf32>
    %343 = tpu.matmul %342, %340, %cst_72 {dimension_numbers = #tpu.dot_dimension_numbers<[1], [0], [0], [1], [0, 0, 1, 1], [], []>} : vector<1x32xbf16>, vector<32x8xbf16>, vector<1x8xf32> -> vector<1x8xf32>
    %344 = arith.addf %343, %341 : vector<1x8xf32>
    %c0_73 = arith.constant 0 : index
    %c0_74 = arith.constant 0 : index
    %345 = vector.load %arg4[%c0_73, %c0_74] : memref<1x8xf32, #tpu.memory_space<vmem>>, vector<1x8xf32>
    tpu.vector_store %arg4[%c0_73, %c0_74], %344 {strides = array<i32>} : memref<1x8xf32, #tpu.memory_space<vmem>>, vector<1x8xf32>,
    return
  }
}

</mosaic_0001>

<llo_original>
// kernel: rnn_forward.1
$region0: #{rnn_forward.1}
  #allocation0 [shape = 'u32[]', space=smem, size = 0x4, offset = 0x4, fixed_abs, tag = 'smem constant byte address 0x4 - core index']
  #allocation1 [shape = 'u32[72,128]{1,0:T(1,128)}', space=vmem, size = 0x9000, scoped, tag = 'internal scratch']
  #allocation2 [shape = 'f32[8,32]{1,0:T(8,128)}', space=vmem, size = 0x1000, scoped, tag = 'scratch operand']
  %s0 = inlined_call_operand.vmem [shape: f32[8,8], index: 0, kind: input, shape index: {}]
  %s1 = inlined_call_operand.hbm [shape: bf16[2,64,128], index: 1, kind: input, shape index: {}]
  %s2 = inlined_call_operand.vmem [shape: f32[2,1,128], index: 2, kind: input, shape index: {}]
  %s3 = inlined_call_operand.vmem [shape: f32[33,8], index: 3, kind: input, shape index: {}]
  %s4 = inlined_call_operand.vmem [shape: f32[1,8], index: 4, kind: output, shape index: {0}]
  %s5 = inlined_call_operand.hbm [shape: f32[1,32], index: 5, kind: output, shape index: {1}]
  %6 = xla_tuple %s4, %s5
  %s7 = sld [smem:[#allocation0]]
  $region38: #{rnn_forward.1} parent=0
    _
  %s9 = ssub.s32 1, %s7
  %s10 = scalar_select 0, %s9, %s7
  $region1: #{rnn_forward.1} parent=0
    #allocation3 [shape = 'u8[32768]{0}', space=vmem, size = 0x8000, scoped, tag = 'input window, operand 1, single buffered']
    #allocation4 [shape = 's32[1]{0}', space=sflag, size = 0x4, scoped, tag = 'scoped memory for rnn_forward.1']
    #allocation5 [shape = 's32[1]{0}', space=sflag, size = 0x4, scoped, tag = 'scoped memory for rnn_forward.1']
    #allocation6 [shape = 'u8[512]{0}', space=vmem, size = 0x400, scoped, tag = 'output window, operand 1, single buffered']
    %11 = vsyncpa [#allocation4], 0
    %12 = vsyncpa [#allocation5], 0
    // Predicated region
    $region2: #{rnn_forward.1} parent=1 // pred_check
      _
    $region3: #{rnn_forward.1} parent=1 // pred_check_branch
      %14 = sbr.rel (0) target = $region5
    $region4: #{rnn_forward.1} parent=1 // pred_region
      _
    $region5: #{rnn_forward.1} parent=1 // pred_fallthru
      _
    // Predicated region
    $region6: #{rnn_forward.1} parent=1 // pred_check
      _
    $region7: #{rnn_forward.1} parent=1 // pred_check_branch
      %16 = sbr.rel (0) target = $region9
    $region8: #{rnn_forward.1} parent=1 // pred_region
      %18 = vsyncadd [#allocation4], 0
      %s19 = sshll.u32 %s1, 4
      %s20 = int_to_ptr.hbm [resolvable:$true] %s19
      %s21 = sshll.u32 [#allocation3], 4
      %s22 = int_to_ptr.vmem [resolvable:$true] %s21
      %27 = dma.hbm_to_vmem [thread:$0]  %s20, 1024, %s22, [#allocation4], 64, 64, 4
    $region9: #{rnn_forward.1} parent=1 // pred_fallthru
      _
    // Predicated region
    $region10: #{rnn_forward.1} parent=1 // pred_check
      _
    $region11: #{rnn_forward.1} parent=1 // pred_check_branch
      %29 = sbr.rel (0) target = $region13
    $region12: #{rnn_forward.1} parent=1 // pred_region
      _
    $region13: #{rnn_forward.1} parent=1 // pred_fallthru
      _
    // Predicated region
    $region14: #{rnn_forward.1} parent=1 // pred_check
      _
    $region15: #{rnn_forward.1} parent=1 // pred_check_branch
      %31 = sbr.rel (0) target = $region17
    $region16: #{rnn_forward.1} parent=1 // pred_region
      _
    $region17: #{rnn_forward.1} parent=1 // pred_fallthru
      _
    // Predicated region
    $region18: #{rnn_forward.1} parent=1 // pred_check
      _
    $region19: #{rnn_forward.1} parent=1 // pred_check_branch
      %33 = sbr.rel (0) target = $region21
    $region20: #{rnn_forward.1} parent=1 // pred_region
      %35 = dma.done [#allocation4], 1024
    $region21: #{rnn_forward.1} parent=1 // pred_fallthru
      _
    %v37 = vld [vmem:[%s0] sm:$0xff]
    %v38 = vpack.c.bf16 %v37, %v37
    %v39 = vld [vmem:[#allocation3] sm:$0xf]
    %v40 = vld [vmem:[#allocation3 + $0x10] sm:$0xf]
    %v41 = vld [vmem:[#allocation3 + $0x14] sm:$0xf]
    %v42 = vld [vmem:[#allocation3 + $0x18] sm:$0xf]
    %v43 = vld [vmem:[#allocation3 + $0x1c] sm:$0xf]
    %v44 = vld [vmem:[%s2] sm:$0x1]
    %v46 = vperm.slane %v44, 0
    %vm48 = vcmask 64512
    %v50 = vsel %vm48, %v38, 0
    %vm52 = vcmask 1043456
    %v54 = vsel %vm52, %v39, 0
    %56 = vmatpush.bf16.msra.mxu0 0
    %57 = vmatpush.bf16.msra.mxu0 0
    %58 = vmatpush.bf16.msra.mxu0 0
    %59 = vmatpush.bf16.msra.mxu0 0
    %60 = vmatpush.bf16.msra.mxu0 0
    %61 = vmatpush.bf16.msra.mxu0 0
    %62 = vmatpush.bf16.msra.mxu0 0
    %63 = vmatpush.bf16.msra.mxu0 %v54
    %64 = vmatmul.bf16.gmra.mxu0 %v50
    %v65 = vpop.f32.mrf.mxu0
    %v66 = vadd.f32 %v46, %v65
    %v67 = vpop.f32.mrf.mxu0
    %68 = vdwg.mxu0
    %v73 = vunpack.c.l.b16 %v40
    %v74 = vunpack.c.l.b16 %v41
    %v75 = vunpack.c.l.b16 %v42
    %v76 = vunpack.c.l.b16 %v43
    %v77 = vpack.c.b16 %v74, %v73
    %v78 = vpack.c.b16 %v76, %v75
    %vm81 = vcmask 261120
    %v83 = vsel %vm81, 0, 0
    %85 = vmatpush.bf16.msra.mxu0 0
    %86 = vmatpush.bf16.msra.mxu0 0
    %87 = vmatpush.bf16.msra.mxu0 0
    %88 = vmatpush.bf16.msra.mxu0 0
    %89 = vmatpush.bf16.msra.mxu0 0
    %90 = vmatpush.bf16.msra.mxu0 0
    %91 = vmatpush.bf16.msra.mxu0 %v78
    %92 = vmatpush.bf16.msra.mxu0 %v77
    %93 = vmatmul.bf16.gmra.mxu0 %v83
    %v94 = vpop.f32.mrf.mxu0
    %v95 = vadd.f32 0.0, %v94
    %v96 = vpop.f32.mrf.mxu0
    %97 = vdwg.mxu0
    %v98 = vadd.f32 %v66, %v95
    %v99 = vxor.u32 %v98, 2147483648
    %v100 = vmul.f32 %v99, 1.442695
    %v101 = vpow.pop %v100
    %v102 = vadd.f32 %v101, 1.0
    %v103 = vrcp.pop %v102
    %v104 = vmul.f32 %v102, %v103
    %v105 = vsub.f32 1.0, %v104
    %v106 = vmul.f32 %v103, %v105
    %v107 = vadd.f32 %v103, %v106
    %vm108 = vweird.f32 %v102
    %vm109 = vweird.f32 %v103
    %vm110 = vmor %vm108, %vm109
    %v111 = vsel %vm110, %v103, %v107
    %v112 = vand.u32 2147483647, %v102
    %vm113 = vcmp.eq.f32.partialorder %v112, 8.507059e+37
    %v114 = vand.u32 %v102, 2147483648
    %v115 = vor.u32 1.1754944e-38, %v114
    %v116 = vsel %vm113, %v115, %v111
    %v117 = vmul.f32 1.0, %v116
    %v118 = vtanh.pop %v98
    %v119 = vmul.f32 %v117, 0.0
    %121 = vrot.lane.b32.xlu0 %v118, 64
    %v122 = vpop.permute.xlu0 %121
    %v124 = vmul.f32 %v117, %v122
    %126 = vrot.lane.b32.xlu0 %v124, 32
    %v127 = vpop.permute.xlu0 %126
    %v129 = vadd.f32 %v119, %v127
    %v130 = vtanh.pop %v129
    %132 = vrot.lane.b32.xlu0 %v130, 64
    %v133 = vpop.permute.xlu0 %132
    %v135 = vmul.f32 %v117, %v133
    %137 = vrot.lane.b32.xlu0 %v135, 32
    %v138 = vpop.permute.xlu0 %137
    %vm140 = vcmask 253952
    %141 = vst.msk [vmem:[#allocation2] sm:$0x1] %vm140, %v138
    %v142 = vpack.c.bf16 %v135, %v135
    %144 = vrot.lane.b32.xlu0 %v142, 32
    %v145 = vpop.permute.xlu0 %144
    %v147 = vsel %vm81, %v145, 0
    %149 = vmatpush.bf16.msra.mxu0 0
    %150 = vmatpush.bf16.msra.mxu0 0
    %151 = vmatpush.bf16.msra.mxu0 0
    %152 = vmatpush.bf16.msra.mxu0 0
    %153 = vmatpush.bf16.msra.mxu0 0
    %154 = vmatpush.bf16.msra.mxu0 0
    %155 = vmatpush.bf16.msra.mxu0 %v78
    %156 = vmatpush.bf16.msra.mxu0 %v77
    %157 = vmatmul.bf16.gmra.mxu0 %v147
    %v158 = vpop.f32.mrf.mxu0
    %v159 = vadd.f32 0.0, %v158
    %v160 = vpop.f32.mrf.mxu0
    %161 = vdwg.mxu0
    %v163 = vrot.slane %v159, 7
    %v165 = vadd.f32 %v66, %v163
    %v166 = vxor.u32 %v165, 2147483648
    %v167 = vmul.f32 %v166, 1.442695
    %v168 = vpow.pop %v167
    %v169 = vadd.f32 %v168, 1.0
    %v170 = vrcp.pop %v169
    %v171 = vmul.f32 %v169, %v170
    %v172 = vsub.f32 1.0, %v171
    %v173 = vmul.f32 %v170, %v172
    %v174 = vadd.f32 %v170, %v173
    %vm175 = vweird.f32 %v169
    %vm176 = vweird.f32 %v170
    %vm177 = vmor %vm175, %vm176
    %v178 = vsel %vm177, %v170, %v174
    %v179 = vand.u32 2147483647, %v169
    %vm180 = vcmp.eq.f32.partialorder %v179, 8.507059e+37
    %v181 = vand.u32 %v169, 2147483648
    %v182 = vor.u32 1.1754944e-38, %v181
    %v183 = vsel %vm180, %v182, %v178
    %v184 = vmul.f32 1.0, %v183
    %v185 = vtanh.pop %v165
    %v187 = vrot.slane %v129, 7
    %v189 = vmul.f32 %v184, %v187
    %191 = vrot.lane.b32.xlu0 %v185, 64
    %v192 = vpop.permute.xlu0 %191
    %v194 = vmul.f32 %v184, %v192
    %196 = vrot.lane.b32.xlu0 %v194, 32
    %v197 = vpop.permute.xlu0 %196
    %v199 = vadd.f32 %v189, %v197
    %v200 = vtanh.pop %v199
    %202 = vrot.lane.b32.xlu0 %v200, 64
    %v203 = vpop.permute.xlu0 %202
    %v205 = vmul.f32 %v184, %v203
    %207 = vrot.lane.b32.xlu0 %v205, 32
    %v208 = vpop.permute.xlu0 %207
    %vm210 = vcmask 254977
    %211 = vst.msk [vmem:[#allocation2] sm:$0x2] %vm210, %v208
    %v212 = vpack.c.bf16 %v205, %v205
    %v214 = vshrl.u32 %v212, 16
    %216 = vrot.lane.b32.xlu0 %v214, 32
    %v217 = vpop.permute.xlu0 %216
    %v219 = vsel %vm81, %v217, 0
    %221 = vmatpush.bf16.msra.mxu0 0
    %222 = vmatpush.bf16.msra.mxu0 0
    %223 = vmatpush.bf16.msra.mxu0 0
    %224 = vmatpush.bf16.msra.mxu0 0
    %225 = vmatpush.bf16.msra.mxu0 0
    %226 = vmatpush.bf16.msra.mxu0 0
    %227 = vmatpush.bf16.msra.mxu0 %v78
    %228 = vmatpush.bf16.msra.mxu0 %v77
    %229 = vmatmul.bf16.gmra.mxu0 %v219
    %v230 = vpop.f32.mrf.mxu0
    %v231 = vadd.f32 0.0, %v230
    %v232 = vpop.f32.mrf.mxu0
    %233 = vdwg.mxu0
    %v235 = vrot.slane %v231, 6
    %v237 = vadd.f32 %v66, %v235
    %v238 = vxor.u32 %v237, 2147483648
    %v239 = vmul.f32 %v238, 1.442695
    %v240 = vpow.pop %v239
    %v241 = vadd.f32 %v240, 1.0
    %v242 = vrcp.pop %v241
    %v243 = vmul.f32 %v241, %v242
    %v244 = vsub.f32 1.0, %v243
    %v245 = vmul.f32 %v242, %v244
    %v246 = vadd.f32 %v242, %v245
    %vm247 = vweird.f32 %v241
    %vm248 = vweird.f32 %v242
    %vm249 = vmor %vm247, %vm248
    %v250 = vsel %vm249, %v242, %v246
    %v251 = vand.u32 2147483647, %v241
    %vm252 = vcmp.eq.f32.partialorder %v251, 8.507059e+37
    %v253 = vand.u32 %v241, 2147483648
    %v254 = vor.u32 1.1754944e-38, %v253
    %v255 = vsel %vm252, %v254, %v250
    %v256 = vmul.f32 1.0, %v255
    %v257 = vtanh.pop %v237
    %v259 = vrot.slane %v199, 7
    %v261 = vmul.f32 %v256, %v259
    %263 = vrot.lane.b32.xlu0 %v257, 64
    %v264 = vpop.permute.xlu0 %263
    %v266 = vmul.f32 %v256, %v264
    %268 = vrot.lane.b32.xlu0 %v266, 32
    %v269 = vpop.permute.xlu0 %268
    %v271 = vadd.f32 %v261, %v269
    %v272 = vtanh.pop %v271
    %274 = vrot.lane.b32.xlu0 %v272, 64
    %v275 = vpop.permute.xlu0 %274
    %v277 = vmul.f32 %v256, %v275
    %279 = vrot.lane.b32.xlu0 %v277, 32
    %v280 = vpop.permute.xlu0 %279
    %vm282 = vcmask 256002
    %283 = vst.msk [vmem:[#allocation2] sm:$0x4] %vm282, %v280
    %v284 = vpack.c.bf16 %v277, %v277
    %v286 = vrot.slane %v284, 1
    %287 = vrot.lane.b32.xlu0 %v286, 32
    %v288 = vpop.permute.xlu0 %287
    %v290 = vsel %vm81, %v288, 0
    %292 = vmatpush.bf16.msra.mxu0 0
    %293 = vmatpush.bf16.msra.mxu0 0
    %294 = vmatpush.bf16.msra.mxu0 0
    %295 = vmatpush.bf16.msra.mxu0 0
    %296 = vmatpush.bf16.msra.mxu0 0
    %297 = vmatpush.bf16.msra.mxu0 0
    %298 = vmatpush.bf16.msra.mxu0 %v78
    %299 = vmatpush.bf16.msra.mxu0 %v77
    %300 = vmatmul.bf16.gmra.mxu0 %v290
    %v301 = vpop.f32.mrf.mxu0
    %v302 = vadd.f32 0.0, %v301
    %v303 = vpop.f32.mrf.mxu0
    %304 = vdwg.mxu0
    %v306 = vrot.slane %v302, 5
    %v308 = vadd.f32 %v66, %v306
    %v309 = vxor.u32 %v308, 2147483648
    %v310 = vmul.f32 %v309, 1.442695
    %v311 = vpow.pop %v310
    %v312 = vadd.f32 %v311, 1.0
    %v313 = vrcp.pop %v312
    %v314 = vmul.f32 %v312, %v313
    %v315 = vsub.f32 1.0, %v314
    %v316 = vmul.f32 %v313, %v315
    %v317 = vadd.f32 %v313, %v316
    %vm318 = vweird.f32 %v312
    %vm319 = vweird.f32 %v313
    %vm320 = vmor %vm318, %vm319
    %v321 = vsel %vm320, %v313, %v317
    %v322 = vand.u32 2147483647, %v312
    %vm323 = vcmp.eq.f32.partialorder %v322, 8.507059e+37
    %v324 = vand.u32 %v312, 2147483648
    %v325 = vor.u32 1.1754944e-38, %v324
    %v326 = vsel %vm323, %v325, %v321
    %v327 = vmul.f32 1.0, %v326
    %v328 = vtanh.pop %v308
    %v330 = vrot.slane %v271, 7
    %v332 = vmul.f32 %v327, %v330
    %334 = vrot.lane.b32.xlu0 %v328, 64
    %v335 = vpop.permute.xlu0 %334
    %v337 = vmul.f32 %v327, %v335
    %339 = vrot.lane.b32.xlu0 %v337, 32
    %v340 = vpop.permute.xlu0 %339
    %v342 = vadd.f32 %v332, %v340
    %v343 = vtanh.pop %v342
    %345 = vrot.lane.b32.xlu0 %v343, 64
    %v346 = vpop.permute.xlu0 %345
    %v348 = vmul.f32 %v327, %v346
    %350 = vrot.lane.b32.xlu0 %v348, 32
    %v351 = vpop.permute.xlu0 %350
    %vm353 = vcmask 257027
    %354 = vst.msk [vmem:[#allocation2] sm:$0x8] %vm353, %v351
    %v355 = vpack.c.bf16 %v348, %v348
    %v357 = vshrl.u32 %v355, 16
    %v359 = vrot.slane %v357, 1
    %360 = vrot.lane.b32.xlu0 %v359, 32
    %v361 = vpop.permute.xlu0 %360
    %v363 = vsel %vm81, %v361, 0
    %365 = vmatpush.bf16.msra.mxu0 0
    %366 = vmatpush.bf16.msra.mxu0 0
    %367 = vmatpush.bf16.msra.mxu0 0
    %368 = vmatpush.bf16.msra.mxu0 0
    %369 = vmatpush.bf16.msra.mxu0 0
    %370 = vmatpush.bf16.msra.mxu0 0
    %371 = vmatpush.bf16.msra.mxu0 %v78
    %372 = vmatpush.bf16.msra.mxu0 %v77
    %373 = vmatmul.bf16.gmra.mxu0 %v363
    %v374 = vpop.f32.mrf.mxu0
    %v375 = vadd.f32 0.0, %v374
    %v376 = vpop.f32.mrf.mxu0
    %377 = vdwg.mxu0
    %v379 = vrot.slane %v375, 4
    %v381 = vadd.f32 %v66, %v379
    %v382 = vxor.u32 %v381, 2147483648
    %v383 = vmul.f32 %v382, 1.442695
    %v384 = vpow.pop %v383
    %v385 = vadd.f32 %v384, 1.0
    %v386 = vrcp.pop %v385
    %v387 = vmul.f32 %v385, %v386
    %v388 = vsub.f32 1.0, %v387
    %v389 = vmul.f32 %v386, %v388
    %v390 = vadd.f32 %v386, %v389
    %vm391 = vweird.f32 %v385
    %vm392 = vweird.f32 %v386
    %vm393 = vmor %vm391, %vm392
    %v394 = vsel %vm393, %v386, %v390
    %v395 = vand.u32 2147483647, %v385
    %vm396 = vcmp.eq.f32.partialorder %v395, 8.507059e+37
    %v397 = vand.u32 %v385, 2147483648
    %v398 = vor.u32 1.1754944e-38, %v397
    %v399 = vsel %vm396, %v398, %v394
    %v400 = vmul.f32 1.0, %v399
    %v401 = vtanh.pop %v381
    %v403 = vrot.slane %v342, 7
    %v405 = vmul.f32 %v400, %v403
    %407 = vrot.lane.b32.xlu0 %v401, 64
    %v408 = vpop.permute.xlu0 %407
    %v410 = vmul.f32 %v400, %v408
    %412 = vrot.lane.b32.xlu0 %v410, 32
    %v413 = vpop.permute.xlu0 %412
    %v415 = vadd.f32 %v405, %v413
    %v416 = vtanh.pop %v415
    %418 = vrot.lane.b32.xlu0 %v416, 64
    %v419 = vpop.permute.xlu0 %418
    %v421 = vmul.f32 %v400, %v419
    %423 = vrot.lane.b32.xlu0 %v421, 32
    %v424 = vpop.permute.xlu0 %423
    %vm426 = vcmask 258052
    %427 = vst.msk [vmem:[#allocation2] sm:$0x10] %vm426, %v424
    %v428 = vpack.c.bf16 %v421, %v421
    %v430 = vrot.slane %v428, 2
    %431 = vrot.lane.b32.xlu0 %v430, 32
    %v432 = vpop.permute.xlu0 %431
    %v434 = vsel %vm81, %v432, 0
    %436 = vmatpush.bf16.msra.mxu0 0
    %437 = vmatpush.bf16.msra.mxu0 0
    %438 = vmatpush.bf16.msra.mxu0 0
    %439 = vmatpush.bf16.msra.mxu0 0
    %440 = vmatpush.bf16.msra.mxu0 0
    %441 = vmatpush.bf16.msra.mxu0 0
    %442 = vmatpush.bf16.msra.mxu0 %v78
    %443 = vmatpush.bf16.msra.mxu0 %v77
    %444 = vmatmul.bf16.gmra.mxu0 %v434
    %v445 = vpop.f32.mrf.mxu0
    %v446 = vadd.f32 0.0, %v445
    %v447 = vpop.f32.mrf.mxu0
    %448 = vdwg.mxu0
    %v450 = vrot.slane %v446, 3
    %v452 = vadd.f32 %v66, %v450
    %v453 = vxor.u32 %v452, 2147483648
    %v454 = vmul.f32 %v453, 1.442695
    %v455 = vpow.pop %v454
    %v456 = vadd.f32 %v455, 1.0
    %v457 = vrcp.pop %v456
    %v458 = vmul.f32 %v456, %v457
    %v459 = vsub.f32 1.0, %v458
    %v460 = vmul.f32 %v457, %v459
    %v461 = vadd.f32 %v457, %v460
    %vm462 = vweird.f32 %v456
    %vm463 = vweird.f32 %v457
    %vm464 = vmor %vm462, %vm463
    %v465 = vsel %vm464, %v457, %v461
    %v466 = vand.u32 2147483647, %v456
    %vm467 = vcmp.eq.f32.partialorder %v466, 8.507059e+37
    %v468 = vand.u32 %v456, 2147483648
    %v469 = vor.u32 1.1754944e-38, %v468
    %v470 = vsel %vm467, %v469, %v465
    %v471 = vmul.f32 1.0, %v470
    %v472 = vtanh.pop %v452
    %v474 = vrot.slane %v415, 7
    %v476 = vmul.f32 %v471, %v474
    %478 = vrot.lane.b32.xlu0 %v472, 64
    %v479 = vpop.permute.xlu0 %478
    %v481 = vmul.f32 %v471, %v479
    %483 = vrot.lane.b32.xlu0 %v481, 32
    %v484 = vpop.permute.xlu0 %483
    %v486 = vadd.f32 %v476, %v484
    %v487 = vtanh.pop %v486
    %489 = vrot.lane.b32.xlu0 %v487, 64
    %v490 = vpop.permute.xlu0 %489
    %v492 = vmul.f32 %v471, %v490
    %494 = vrot.lane.b32.xlu0 %v492, 32
    %v495 = vpop.permute.xlu0 %494
    %vm497 = vcmask 259077
    %498 = vst.msk [vmem:[#allocation2] sm:$0x20] %vm497, %v495
    %v499 = vpack.c.bf16 %v492, %v492
    %v501 = vshrl.u32 %v499, 16
    %v503 = vrot.slane %v501, 2
    %504 = vrot.lane.b32.xlu0 %v503, 32
    %v505 = vpop.permute.xlu0 %504
    %v507 = vsel %vm81, %v505, 0
    %509 = vmatpush.bf16.msra.mxu0 0
    %510 = vmatpush.bf16.msra.mxu0 0
    %511 = vmatpush.bf16.msra.mxu0 0
    %512 = vmatpush.bf16.msra.mxu0 0
    %513 = vmatpush.bf16.msra.mxu0 0
    %514 = vmatpush.bf16.msra.mxu0 0
    %515 = vmatpush.bf16.msra.mxu0 %v78
    %516 = vmatpush.bf16.msra.mxu0 %v77
    %517 = vmatmul.bf16.gmra.mxu0 %v507
    %v518 = vpop.f32.mrf.mxu0
    %v519 = vadd.f32 0.0, %v518
    %v520 = vpop.f32.mrf.mxu0
    %521 = vdwg.mxu0
    %v523 = vrot.slane %v519, 2
    %v525 = vadd.f32 %v66, %v523
    %v526 = vxor.u32 %v525, 2147483648
    %v527 = vmul.f32 %v526, 1.442695
    %v528 = vpow.pop %v527
    %v529 = vadd.f32 %v528, 1.0
    %v530 = vrcp.pop %v529
    %v531 = vmul.f32 %v529, %v530
    %v532 = vsub.f32 1.0, %v531
    %v533 = vmul.f32 %v530, %v532
    %v534 = vadd.f32 %v530, %v533
    %vm535 = vweird.f32 %v529
    %vm536 = vweird.f32 %v530
    %vm537 = vmor %vm535, %vm536
    %v538 = vsel %vm537, %v530, %v534
    %v539 = vand.u32 2147483647, %v529
    %vm540 = vcmp.eq.f32.partialorder %v539, 8.507059e+37
    %v541 = vand.u32 %v529, 2147483648
    %v542 = vor.u32 1.1754944e-38, %v541
    %v543 = vsel %vm540, %v542, %v538
    %v544 = vmul.f32 1.0, %v543
    %v545 = vtanh.pop %v525
    %v547 = vrot.slane %v486, 7
    %v549 = vmul.f32 %v544, %v547
    %551 = vrot.lane.b32.xlu0 %v545, 64
    %v552 = vpop.permute.xlu0 %551
    %v554 = vmul.f32 %v544, %v552
    %556 = vrot.lane.b32.xlu0 %v554, 32
    %v557 = vpop.permute.xlu0 %556
    %v559 = vadd.f32 %v549, %v557
    %v560 = vtanh.pop %v559
    %562 = vrot.lane.b32.xlu0 %v560, 64
    %v563 = vpop.permute.xlu0 %562
    %v565 = vmul.f32 %v544, %v563
    %567 = vrot.lane.b32.xlu0 %v565, 32
    %v568 = vpop.permute.xlu0 %567
    %vm570 = vcmask 260102
    %571 = vst.msk [vmem:[#allocation2] sm:$0x40] %vm570, %v568
    %v572 = vpack.c.bf16 %v565, %v565
    %v574 = vrot.slane %v572, 3
    %575 = vrot.lane.b32.xlu0 %v574, 32
    %v576 = vpop.permute.xlu0 %575
    %v578 = vsel %vm81, %v576, 0
    %580 = vmatpush.bf16.msra.mxu0 0
    %581 = vmatpush.bf16.msra.mxu0 0
    %582 = vmatpush.bf16.msra.mxu0 0
    %583 = vmatpush.bf16.msra.mxu0 0
    %584 = vmatpush.bf16.msra.mxu0 0
    %585 = vmatpush.bf16.msra.mxu0 0
    %586 = vmatpush.bf16.msra.mxu0 %v78
    %587 = vmatpush.bf16.msra.mxu0 %v77
    %588 = vmatmul.bf16.gmra.mxu0 %v578
    %v589 = vpop.f32.mrf.mxu0
    %v590 = vadd.f32 0.0, %v589
    %v591 = vpop.f32.mrf.mxu0
    %592 = vdwg.mxu0
    %v594 = vrot.slane %v590, 1
    %v596 = vadd.f32 %v66, %v594
    %v597 = vxor.u32 %v596, 2147483648
    %v598 = vmul.f32 %v597, 1.442695
    %v599 = vpow.pop %v598
    %v600 = vadd.f32 %v599, 1.0
    %v601 = vrcp.pop %v600
    %v602 = vmul.f32 %v600, %v601
    %v603 = vsub.f32 1.0, %v602
    %v604 = vmul.f32 %v601, %v603
    %v605 = vadd.f32 %v601, %v604
    %vm606 = vweird.f32 %v600
    %vm607 = vweird.f32 %v601
    %vm608 = vmor %vm606, %vm607
    %v609 = vsel %vm608, %v601, %v605
    %v610 = vand.u32 2147483647, %v600
    %vm611 = vcmp.eq.f32.partialorder %v610, 8.507059e+37
    %v612 = vand.u32 %v600, 2147483648
    %v613 = vor.u32 1.1754944e-38, %v612
    %v614 = vsel %vm611, %v613, %v609
    %v615 = vmul.f32 1.0, %v614
    %v616 = vtanh.pop %v596
    %v618 = vrot.slane %v559, 7
    %v620 = vmul.f32 %v615, %v618
    %622 = vrot.lane.b32.xlu0 %v616, 64
    %v623 = vpop.permute.xlu0 %622
    %v625 = vmul.f32 %v615, %v623
    %627 = vrot.lane.b32.xlu0 %v625, 32
    %v628 = vpop.permute.xlu0 %627
    %v630 = vadd.f32 %v620, %v628
    %v631 = vtanh.pop %v630
    %633 = vrot.lane.b32.xlu0 %v631, 64
    %v634 = vpop.permute.xlu0 %633
    %v636 = vmul.f32 %v615, %v634
    %638 = vrot.lane.b32.xlu0 %v636, 32
    %v639 = vpop.permute.xlu0 %638
    %vm641 = vcmask 261127
    %642 = vst.msk [vmem:[#allocation2] sm:$0x80] %vm641, %v639
    %v643 = vld [vmem:[#allocation2] sm:$0xff]
    %v644 = vpack.c.bf16 %v643, %v643
    %s645 = scalar_lea.vmem [#allocation3], 32
    %v646 = vld [vmem:[%s645] sm:$0xf]
    %v647 = vld [vmem:[%s645 + $0x4] sm:$0xf]
    %v648 = vld [vmem:[%s645 + $0x8] sm:$0xf]
    %v649 = vld [vmem:[%s645 + $0xc] sm:$0xf]
    %v650 = vld [vmem:[%s645 + $0x10] sm:$0xf]
    %v651 = vld [vmem:[%s645 + $0x14] sm:$0xf]
    %v652 = vld [vmem:[%s645 + $0x18] sm:$0xf]
    %v653 = vld [vmem:[%s645 + $0x1c] sm:$0xf]
    %s654 = scalar_lea.vmem %s2, 1
    %v655 = vld [vmem:[%s654] sm:$0x1]
    %v657 = vperm.slane %v655, 0
    %v663 = vunpack.c.l.b16 %v646
    %v664 = vunpack.c.l.b16 %v647
    %v665 = vunpack.c.l.b16 %v648
    %v666 = vunpack.c.l.b16 %v649
    %v667 = vpack.c.b16 %v664, %v663
    %v668 = vpack.c.b16 %v666, %v665
    %v672 = vsel %vm81, %v644, 0
    %674 = vmatpush.bf16.msra.mxu0 0
    %675 = vmatpush.bf16.msra.mxu0 0
    %676 = vmatpush.bf16.msra.mxu0 0
    %677 = vmatpush.bf16.msra.mxu0 0
    %678 = vmatpush.bf16.msra.mxu0 0
    %679 = vmatpush.bf16.msra.mxu0 0
    %680 = vmatpush.bf16.msra.mxu0 %v668
    %681 = vmatpush.bf16.msra.mxu0 %v667
    %682 = vmatmul.bf16.gmra.mxu0 %v672
    %v683 = vpop.f32.mrf.mxu0
    %v684 = vadd.f32 %v657, %v683
    %v685 = vpop.f32.mrf.mxu0
    %686 = vdwg.mxu0
    %v691 = vunpack.c.l.b16 %v650
    %v692 = vunpack.c.l.b16 %v651
    %v693 = vunpack.c.l.b16 %v652
    %v694 = vunpack.c.l.b16 %v653
    %v695 = vpack.c.b16 %v692, %v691
    %v696 = vpack.c.b16 %v694, %v693
    %699 = vmatpush.bf16.msra.mxu0 0
    %700 = vmatpush.bf16.msra.mxu0 0
    %701 = vmatpush.bf16.msra.mxu0 0
    %702 = vmatpush.bf16.msra.mxu0 0
    %703 = vmatpush.bf16.msra.mxu0 0
    %704 = vmatpush.bf16.msra.mxu0 0
    %705 = vmatpush.bf16.msra.mxu0 %v696
    %706 = vmatpush.bf16.msra.mxu0 %v695
    %707 = vmatmul.bf16.gmra.mxu0 %v83
    %v708 = vpop.f32.mrf.mxu0
    %v709 = vadd.f32 0.0, %v708
    %v710 = vpop.f32.mrf.mxu0
    %711 = vdwg.mxu0
    %v712 = vadd.f32 %v684, %v709
    %v713 = vxor.u32 %v712, 2147483648
    %v714 = vmul.f32 %v713, 1.442695
    %v715 = vpow.pop %v714
    %v716 = vadd.f32 %v715, 1.0
    %v717 = vrcp.pop %v716
    %v718 = vmul.f32 %v716, %v717
    %v719 = vsub.f32 1.0, %v718
    %v720 = vmul.f32 %v717, %v719
    %v721 = vadd.f32 %v717, %v720
    %vm722 = vweird.f32 %v716
    %vm723 = vweird.f32 %v717
    %vm724 = vmor %vm722, %vm723
    %v725 = vsel %vm724, %v717, %v721
    %v726 = vand.u32 2147483647, %v716
    %vm727 = vcmp.eq.f32.partialorder %v726, 8.507059e+37
    %v728 = vand.u32 %v716, 2147483648
    %v729 = vor.u32 1.1754944e-38, %v728
    %v730 = vsel %vm727, %v729, %v725
    %v731 = vmul.f32 1.0, %v730
    %v732 = vtanh.pop %v712
    %v733 = vmul.f32 %v731, 0.0
    %735 = vrot.lane.b32.xlu0 %v732, 64
    %v736 = vpop.permute.xlu0 %735
    %v738 = vmul.f32 %v731, %v736
    %740 = vrot.lane.b32.xlu0 %v738, 32
    %v741 = vpop.permute.xlu0 %740
    %v743 = vadd.f32 %v733, %v741
    %v744 = vtanh.pop %v743
    %746 = vrot.lane.b32.xlu0 %v744, 64
    %v747 = vpop.permute.xlu0 %746
    %v749 = vmul.f32 %v731, %v747
    %v750 = vpack.c.bf16 %v749, %v749
    %752 = vrot.lane.b32.xlu0 %v750, 32
    %v753 = vpop.permute.xlu0 %752
    %v755 = vsel %vm81, %v753, 0
    %757 = vmatpush.bf16.msra.mxu0 0
    %758 = vmatpush.bf16.msra.mxu0 0
    %759 = vmatpush.bf16.msra.mxu0 0
    %760 = vmatpush.bf16.msra.mxu0 0
    %761 = vmatpush.bf16.msra.mxu0 0
    %762 = vmatpush.bf16.msra.mxu0 0
    %763 = vmatpush.bf16.msra.mxu0 %v696
    %764 = vmatpush.bf16.msra.mxu0 %v695
    %765 = vmatmul.bf16.gmra.mxu0 %v755
    %v766 = vpop.f32.mrf.mxu0
    %v767 = vadd.f32 0.0, %v766
    %v768 = vpop.f32.mrf.mxu0
    %769 = vdwg.mxu0
    %v771 = vrot.slane %v767, 7
    %v773 = vadd.f32 %v684, %v771
    %v774 = vxor.u32 %v773, 2147483648
    %v775 = vmul.f32 %v774, 1.442695
    %v776 = vpow.pop %v775
    %v777 = vadd.f32 %v776, 1.0
    %v778 = vrcp.pop %v777
    %v779 = vmul.f32 %v777, %v778
    %v780 = vsub.f32 1.0, %v779
    %v781 = vmul.f32 %v778, %v780
    %v782 = vadd.f32 %v778, %v781
    %vm783 = vweird.f32 %v777
    %vm784 = vweird.f32 %v778
    %vm785 = vmor %vm783, %vm784
    %v786 = vsel %vm785, %v778, %v782
    %v787 = vand.u32 2147483647, %v777
    %vm788 = vcmp.eq.f32.partialorder %v787, 8.507059e+37
    %v789 = vand.u32 %v777, 2147483648
    %v790 = vor.u32 1.1754944e-38, %v789
    %v791 = vsel %vm788, %v790, %v786
    %v792 = vmul.f32 1.0, %v791
    %v793 = vtanh.pop %v773
    %v795 = vrot.slane %v743, 7
    %v797 = vmul.f32 %v792, %v795
    %799 = vrot.lane.b32.xlu0 %v793, 64
    %v800 = vpop.permute.xlu0 %799
    %v802 = vmul.f32 %v792, %v800
    %804 = vrot.lane.b32.xlu0 %v802, 32
    %v805 = vpop.permute.xlu0 %804
    %v807 = vadd.f32 %v797, %v805
    %v808 = vtanh.pop %v807
    %810 = vrot.lane.b32.xlu0 %v808, 64
    %v811 = vpop.permute.xlu0 %810
    %v813 = vmul.f32 %v792, %v811
    %v814 = vpack.c.bf16 %v813, %v813
    %v816 = vshrl.u32 %v814, 16
    %818 = vrot.lane.b32.xlu0 %v816, 32
    %v819 = vpop.permute.xlu0 %818
    %v821 = vsel %vm81, %v819, 0
    %823 = vmatpush.bf16.msra.mxu0 0
    %824 = vmatpush.bf16.msra.mxu0 0
    %825 = vmatpush.bf16.msra.mxu0 0
    %826 = vmatpush.bf16.msra.mxu0 0
    %827 = vmatpush.bf16.msra.mxu0 0
    %828 = vmatpush.bf16.msra.mxu0 0
    %829 = vmatpush.bf16.msra.mxu0 %v696
    %830 = vmatpush.bf16.msra.mxu0 %v695
    %831 = vmatmul.bf16.gmra.mxu0 %v821
    %v832 = vpop.f32.mrf.mxu0
    %v833 = vadd.f32 0.0, %v832
    %v834 = vpop.f32.mrf.mxu0
    %835 = vdwg.mxu0
    %v837 = vrot.slane %v833, 6
    %v839 = vadd.f32 %v684, %v837
    %v840 = vxor.u32 %v839, 2147483648
    %v841 = vmul.f32 %v840, 1.442695
    %v842 = vpow.pop %v841
    %v843 = vadd.f32 %v842, 1.0
    %v844 = vrcp.pop %v843
    %v845 = vmul.f32 %v843, %v844
    %v846 = vsub.f32 1.0, %v845
    %v847 = vmul.f32 %v844, %v846
    %v848 = vadd.f32 %v844, %v847
    %vm849 = vweird.f32 %v843
    %vm850 = vweird.f32 %v844
    %vm851 = vmor %vm849, %vm850
    %v852 = vsel %vm851, %v844, %v848
    %v853 = vand.u32 2147483647, %v843
    %vm854 = vcmp.eq.f32.partialorder %v853, 8.507059e+37
    %v855 = vand.u32 %v843, 2147483648
    %v856 = vor.u32 1.1754944e-38, %v855
    %v857 = vsel %vm854, %v856, %v852
    %v858 = vmul.f32 1.0, %v857
    %v859 = vtanh.pop %v839
    %v861 = vrot.slane %v807, 7
    %v863 = vmul.f32 %v858, %v861
    %865 = vrot.lane.b32.xlu0 %v859, 64
    %v866 = vpop.permute.xlu0 %865
    %v868 = vmul.f32 %v858, %v866
    %870 = vrot.lane.b32.xlu0 %v868, 32
    %v871 = vpop.permute.xlu0 %870
    %v873 = vadd.f32 %v863, %v871
    %v874 = vtanh.pop %v873
    %876 = vrot.lane.b32.xlu0 %v874, 64
    %v877 = vpop.permute.xlu0 %876
    %v879 = vmul.f32 %v858, %v877
    %v880 = vpack.c.bf16 %v879, %v879
    %v882 = vrot.slane %v880, 1
    %883 = vrot.lane.b32.xlu0 %v882, 32
    %v884 = vpop.permute.xlu0 %883
    %v886 = vsel %vm81, %v884, 0
    %888 = vmatpush.bf16.msra.mxu0 0
    %889 = vmatpush.bf16.msra.mxu0 0
    %890 = vmatpush.bf16.msra.mxu0 0
    %891 = vmatpush.bf16.msra.mxu0 0
    %892 = vmatpush.bf16.msra.mxu0 0
    %893 = vmatpush.bf16.msra.mxu0 0
    %894 = vmatpush.bf16.msra.mxu0 %v696
    %895 = vmatpush.bf16.msra.mxu0 %v695
    %896 = vmatmul.bf16.gmra.mxu0 %v886
    %v897 = vpop.f32.mrf.mxu0
    %v898 = vadd.f32 0.0, %v897
    %v899 = vpop.f32.mrf.mxu0
    %900 = vdwg.mxu0
    %v902 = vrot.slane %v898, 5
    %v904 = vadd.f32 %v684, %v902
    %v905 = vxor.u32 %v904, 2147483648
    %v906 = vmul.f32 %v905, 1.442695
    %v907 = vpow.pop %v906
    %v908 = vadd.f32 %v907, 1.0
    %v909 = vrcp.pop %v908
    %v910 = vmul.f32 %v908, %v909
    %v911 = vsub.f32 1.0, %v910
    %v912 = vmul.f32 %v909, %v911
    %v913 = vadd.f32 %v909, %v912
    %vm914 = vweird.f32 %v908
    %vm915 = vweird.f32 %v909
    %vm916 = vmor %vm914, %vm915
    %v917 = vsel %vm916, %v909, %v913
    %v918 = vand.u32 2147483647, %v908
    %vm919 = vcmp.eq.f32.partialorder %v918, 8.507059e+37
    %v920 = vand.u32 %v908, 2147483648
    %v921 = vor.u32 1.1754944e-38, %v920
    %v922 = vsel %vm919, %v921, %v917
    %v923 = vmul.f32 1.0, %v922
    %v924 = vtanh.pop %v904
    %v926 = vrot.slane %v873, 7
    %v928 = vmul.f32 %v923, %v926
    %930 = vrot.lane.b32.xlu0 %v924, 64
    %v931 = vpop.permute.xlu0 %930
    %v933 = vmul.f32 %v923, %v931
    %935 = vrot.lane.b32.xlu0 %v933, 32
    %v936 = vpop.permute.xlu0 %935
    %v938 = vadd.f32 %v928, %v936
    %v939 = vtanh.pop %v938
    %941 = vrot.lane.b32.xlu0 %v939, 64
    %v942 = vpop.permute.xlu0 %941
    %v944 = vmul.f32 %v923, %v942
    %v945 = vpack.c.bf16 %v944, %v944
    %v947 = vshrl.u32 %v945, 16
    %v949 = vrot.slane %v947, 1
    %950 = vrot.lane.b32.xlu0 %v949, 32
    %v951 = vpop.permute.xlu0 %950
    %v953 = vsel %vm81, %v951, 0
    %955 = vmatpush.bf16.msra.mxu0 0
    %956 = vmatpush.bf16.msra.mxu0 0
    %957 = vmatpush.bf16.msra.mxu0 0
    %958 = vmatpush.bf16.msra.mxu0 0
    %959 = vmatpush.bf16.msra.mxu0 0
    %960 = vmatpush.bf16.msra.mxu0 0
    %961 = vmatpush.bf16.msra.mxu0 %v696
    %962 = vmatpush.bf16.msra.mxu0 %v695
    %963 = vmatmul.bf16.gmra.mxu0 %v953
    %v964 = vpop.f32.mrf.mxu0
    %v965 = vadd.f32 0.0, %v964
    %v966 = vpop.f32.mrf.mxu0
    %967 = vdwg.mxu0
    %v969 = vrot.slane %v965, 4
    %v971 = vadd.f32 %v684, %v969
    %v972 = vxor.u32 %v971, 2147483648
    %v973 = vmul.f32 %v972, 1.442695
    %v974 = vpow.pop %v973
    %v975 = vadd.f32 %v974, 1.0
    %v976 = vrcp.pop %v975
    %v977 = vmul.f32 %v975, %v976
    %v978 = vsub.f32 1.0, %v977
    %v979 = vmul.f32 %v976, %v978
    %v980 = vadd.f32 %v976, %v979
    %vm981 = vweird.f32 %v975
    %vm982 = vweird.f32 %v976
    %vm983 = vmor %vm981, %vm982
    %v984 = vsel %vm983, %v976, %v980
    %v985 = vand.u32 2147483647, %v975
    %vm986 = vcmp.eq.f32.partialorder %v985, 8.507059e+37
    %v987 = vand.u32 %v975, 2147483648
    %v988 = vor.u32 1.1754944e-38, %v987
    %v989 = vsel %vm986, %v988, %v984
    %v990 = vmul.f32 1.0, %v989
    %v991 = vtanh.pop %v971
    %v993 = vrot.slane %v938, 7
    %v995 = vmul.f32 %v990, %v993
    %997 = vrot.lane.b32.xlu0 %v991, 64
    %v998 = vpop.permute.xlu0 %997
    %v1000 = vmul.f32 %v990, %v998
    %1002 = vrot.lane.b32.xlu0 %v1000, 32
    %v1003 = vpop.permute.xlu0 %1002
    %v1005 = vadd.f32 %v995, %v1003
    %v1006 = vtanh.pop %v1005
    %1008 = vrot.lane.b32.xlu0 %v1006, 64
    %v1009 = vpop.permute.xlu0 %1008
    %v1011 = vmul.f32 %v990, %v1009
    %v1012 = vpack.c.bf16 %v1011, %v1011
    %v1014 = vrot.slane %v1012, 2
    %1015 = vrot.lane.b32.xlu0 %v1014, 32
    %v1016 = vpop.permute.xlu0 %1015
    %v1018 = vsel %vm81, %v1016, 0
    %1020 = vmatpush.bf16.msra.mxu0 0
    %1021 = vmatpush.bf16.msra.mxu0 0
    %1022 = vmatpush.bf16.msra.mxu0 0
    %1023 = vmatpush.bf16.msra.mxu0 0
    %1024 = vmatpush.bf16.msra.mxu0 0
    %1025 = vmatpush.bf16.msra.mxu0 0
    %1026 = vmatpush.bf16.msra.mxu0 %v696
    %1027 = vmatpush.bf16.msra.mxu0 %v695
    %1028 = vmatmul.bf16.gmra.mxu0 %v1018
    %v1029 = vpop.f32.mrf.mxu0
    %v1030 = vadd.f32 0.0, %v1029
    %v1031 = vpop.f32.mrf.mxu0
    %1032 = vdwg.mxu0
    %v1034 = vrot.slane %v1030, 3
    %v1036 = vadd.f32 %v684, %v1034
    %v1037 = vxor.u32 %v1036, 2147483648
    %v1038 = vmul.f32 %v1037, 1.442695
    %v1039 = vpow.pop %v1038
    %v1040 = vadd.f32 %v1039, 1.0
    %v1041 = vrcp.pop %v1040
    %v1042 = vmul.f32 %v1040, %v1041
    %v1043 = vsub.f32 1.0, %v1042
    %v1044 = vmul.f32 %v1041, %v1043
    %v1045 = vadd.f32 %v1041, %v1044
    %vm1046 = vweird.f32 %v1040
    %vm1047 = vweird.f32 %v1041
    %vm1048 = vmor %vm1046, %vm1047
    %v1049 = vsel %vm1048, %v1041, %v1045
    %v1050 = vand.u32 2147483647, %v1040
    %vm1051 = vcmp.eq.f32.partialorder %v1050, 8.507059e+37
    %v1052 = vand.u32 %v1040, 2147483648
    %v1053 = vor.u32 1.1754944e-38, %v1052
    %v1054 = vsel %vm1051, %v1053, %v1049
    %v1055 = vmul.f32 1.0, %v1054
    %v1056 = vtanh.pop %v1036
    %v1058 = vrot.slane %v1005, 7
    %v1060 = vmul.f32 %v1055, %v1058
    %1062 = vrot.lane.b32.xlu0 %v1056, 64
    %v1063 = vpop.permute.xlu0 %1062
    %v1065 = vmul.f32 %v1055, %v1063
    %1067 = vrot.lane.b32.xlu0 %v1065, 32
    %v1068 = vpop.permute.xlu0 %1067
    %v1070 = vadd.f32 %v1060, %v1068
    %v1071 = vtanh.pop %v1070
    %1073 = vrot.lane.b32.xlu0 %v1071, 64
    %v1074 = vpop.permute.xlu0 %1073
    %v1076 = vmul.f32 %v1055, %v1074
    %v1077 = vpack.c.bf16 %v1076, %v1076
    %v1079 = vshrl.u32 %v1077, 16
    %v1081 = vrot.slane %v1079, 2
    %1082 = vrot.lane.b32.xlu0 %v1081, 32
    %v1083 = vpop.permute.xlu0 %1082
    %v1085 = vsel %vm81, %v1083, 0
    %1087 = vmatpush.bf16.msra.mxu0 0
    %1088 = vmatpush.bf16.msra.mxu0 0
    %1089 = vmatpush.bf16.msra.mxu0 0
    %1090 = vmatpush.bf16.msra.mxu0 0
    %1091 = vmatpush.bf16.msra.mxu0 0
    %1092 = vmatpush.bf16.msra.mxu0 0
    %1093 = vmatpush.bf16.msra.mxu0 %v696
    %1094 = vmatpush.bf16.msra.mxu0 %v695
    %1095 = vmatmul.bf16.gmra.mxu0 %v1085
    %v1096 = vpop.f32.mrf.mxu0
    %v1097 = vadd.f32 0.0, %v1096
    %v1098 = vpop.f32.mrf.mxu0
    %1099 = vdwg.mxu0
    %v1101 = vrot.slane %v1097, 2
    %v1103 = vadd.f32 %v684, %v1101
    %v1104 = vxor.u32 %v1103, 2147483648
    %v1105 = vmul.f32 %v1104, 1.442695
    %v1106 = vpow.pop %v1105
    %v1107 = vadd.f32 %v1106, 1.0
    %v1108 = vrcp.pop %v1107
    %v1109 = vmul.f32 %v1107, %v1108
    %v1110 = vsub.f32 1.0, %v1109
    %v1111 = vmul.f32 %v1108, %v1110
    %v1112 = vadd.f32 %v1108, %v1111
    %vm1113 = vweird.f32 %v1107
    %vm1114 = vweird.f32 %v1108
    %vm1115 = vmor %vm1113, %vm1114
    %v1116 = vsel %vm1115, %v1108, %v1112
    %v1117 = vand.u32 2147483647, %v1107
    %vm1118 = vcmp.eq.f32.partialorder %v1117, 8.507059e+37
    %v1119 = vand.u32 %v1107, 2147483648
    %v1120 = vor.u32 1.1754944e-38, %v1119
    %v1121 = vsel %vm1118, %v1120, %v1116
    %v1122 = vmul.f32 1.0, %v1121
    %v1123 = vtanh.pop %v1103
    %v1125 = vrot.slane %v1070, 7
    %v1127 = vmul.f32 %v1122, %v1125
    %1129 = vrot.lane.b32.xlu0 %v1123, 64
    %v1130 = vpop.permute.xlu0 %1129
    %v1132 = vmul.f32 %v1122, %v1130
    %1134 = vrot.lane.b32.xlu0 %v1132, 32
    %v1135 = vpop.permute.xlu0 %1134
    %v1137 = vadd.f32 %v1127, %v1135
    %v1138 = vtanh.pop %v1137
    %1140 = vrot.lane.b32.xlu0 %v1138, 64
    %v1141 = vpop.permute.xlu0 %1140
    %v1143 = vmul.f32 %v1122, %v1141
    %v1144 = vpack.c.bf16 %v1143, %v1143
    %v1146 = vrot.slane %v1144, 3
    %1147 = vrot.lane.b32.xlu0 %v1146, 32
    %v1148 = vpop.permute.xlu0 %1147
    %v1150 = vsel %vm81, %v1148, 0
    %1152 = vmatpush.bf16.msra.mxu0 0
    %1153 = vmatpush.bf16.msra.mxu0 0
    %1154 = vmatpush.bf16.msra.mxu0 0
    %1155 = vmatpush.bf16.msra.mxu0 0
    %1156 = vmatpush.bf16.msra.mxu0 0
    %1157 = vmatpush.bf16.msra.mxu0 0
    %1158 = vmatpush.bf16.msra.mxu0 %v696
    %1159 = vmatpush.bf16.msra.mxu0 %v695
    %1160 = vmatmul.bf16.gmra.mxu0 %v1150
    %v1161 = vpop.f32.mrf.mxu0
    %v1162 = vadd.f32 0.0, %v1161
    %v1163 = vpop.f32.mrf.mxu0
    %1164 = vdwg.mxu0
    %v1166 = vrot.slane %v1162, 1
    %v1168 = vadd.f32 %v684, %v1166
    %v1169 = vxor.u32 %v1168, 2147483648
    %v1170 = vmul.f32 %v1169, 1.442695
    %v1171 = vpow.pop %v1170
    %v1172 = vadd.f32 %v1171, 1.0
    %v1173 = vrcp.pop %v1172
    %v1174 = vmul.f32 %v1172, %v1173
    %v1175 = vsub.f32 1.0, %v1174
    %v1176 = vmul.f32 %v1173, %v1175
    %v1177 = vadd.f32 %v1173, %v1176
    %vm1178 = vweird.f32 %v1172
    %vm1179 = vweird.f32 %v1173
    %vm1180 = vmor %vm1178, %vm1179
    %v1181 = vsel %vm1180, %v1173, %v1177
    %v1182 = vand.u32 2147483647, %v1172
    %vm1183 = vcmp.eq.f32.partialorder %v1182, 8.507059e+37
    %v1184 = vand.u32 %v1172, 2147483648
    %v1185 = vor.u32 1.1754944e-38, %v1184
    %v1186 = vsel %vm1183, %v1185, %v1181
    %v1187 = vmul.f32 1.0, %v1186
    %v1188 = vtanh.pop %v1168
    %v1190 = vrot.slane %v1137, 7
    %v1192 = vmul.f32 %v1187, %v1190
    %1194 = vrot.lane.b32.xlu0 %v1188, 64
    %v1195 = vpop.permute.xlu0 %1194
    %v1197 = vmul.f32 %v1187, %v1195
    %1199 = vrot.lane.b32.xlu0 %v1197, 32
    %v1200 = vpop.permute.xlu0 %1199
    %v1202 = vadd.f32 %v1192, %v1200
    %v1203 = vtanh.pop %v1202
    %1205 = vrot.lane.b32.xlu0 %v1203, 64
    %v1206 = vpop.permute.xlu0 %1205
    %v1208 = vmul.f32 %v1187, %v1206
    %1210 = vrot.lane.b32.xlu0 %v1208, 32
    %v1211 = vpop.permute.xlu0 %1210
    %1213 = vst.msk [vmem:[#allocation6 - $0x7] sm:$0x80] %vm641, %v1211
    %v1214 = vld [vmem:[%s3] sm:$0xff]
    %v1215 = vld [vmem:[%s3 + $0x8] sm:$0xff]
    %v1216 = vld [vmem:[%s3 + $0x10] sm:$0xff]
    %v1217 = vld [vmem:[%s3 + $0x18] sm:$0xff]
    %v1218 = vpack.c.bf16 %v1215, %v1214
    %v1219 = vpack.c.bf16 %v1217, %v1216
    %v1220 = vld [vmem:[%s3 + $0x20] sm:$0x1]
    %v1221 = vpack.c.bf16 %v1208, %v1208
    %v1223 = vshrl.u32 %v1221, 16
    %v1225 = vrot.slane %v1223, 3
    %1226 = vrot.lane.b32.xlu0 %v1225, 32
    %v1227 = vpop.permute.xlu0 %1226
    %v1229 = vsel %vm81, %v1227, 0
    %1231 = vmatpush.bf16.msra.mxu0 0
    %1232 = vmatpush.bf16.msra.mxu0 0
    %1233 = vmatpush.bf16.msra.mxu0 0
    %1234 = vmatpush.bf16.msra.mxu0 0
    %1235 = vmatpush.bf16.msra.mxu0 0
    %1236 = vmatpush.bf16.msra.mxu0 0
    %1237 = vmatpush.bf16.msra.mxu0 %v1219
    %1238 = vmatpush.bf16.msra.mxu0 %v1218
    %1239 = vmatmul.bf16.gmra.mxu0 %v1229
    %v1240 = vpop.f32.mrf.mxu0
    %v1241 = vadd.f32 %v1220, %v1240
    %v1242 = vpop.f32.mrf.mxu0
    %1243 = vdwg.mxu0
    %vm1244 = vcmask 57344
    %1245 = vst.msk [vmem:[%s4] sm:$0x1] %vm1244, %v1241
    // Predicated region
    $region22: #{rnn_forward.1} parent=1 // pred_check
      _
    $region23: #{rnn_forward.1} parent=1 // pred_check_branch
      %1247 = sbr.rel (0) target = $region25
    $region24: #{rnn_forward.1} parent=1 // pred_region
      _
    $region25: #{rnn_forward.1} parent=1 // pred_fallthru
      _
    // Predicated region
    $region26: #{rnn_forward.1} parent=1 // pred_check
      _
    $region27: #{rnn_forward.1} parent=1 // pred_check_branch
      %1249 = sbr.rel (0) target = $region29
    $region28: #{rnn_forward.1} parent=1 // pred_region
      %1251 = vsyncadd [#allocation5], 0
      %s1253 = sshll.u32 [#allocation6], 4
      %s1254 = int_to_ptr.vmem [resolvable:$true] %s1253
      %s1255 = sshll.u32 %s5, 4
      %s1256 = int_to_ptr.hbm [resolvable:$true] %s1255
      %1258 = dma.vmem_to_hbm [thread:$0]  %s1254, 16, %s1256, [#allocation5]
    $region29: #{rnn_forward.1} parent=1 // pred_fallthru
      _
    // Predicated region
    $region30: #{rnn_forward.1} parent=1 // pred_check
      _
    $region31: #{rnn_forward.1} parent=1 // pred_check_branch
      %1260 = sbr.rel (0) target = $region33
    $region32: #{rnn_forward.1} parent=1 // pred_region
      _
    $region33: #{rnn_forward.1} parent=1 // pred_fallthru
      _
    // Predicated region
    $region34: #{rnn_forward.1} parent=1 // pred_check
      _
    $region35: #{rnn_forward.1} parent=1 // pred_check_branch
      %1262 = sbr.rel (0) target = $region37
    $region36: #{rnn_forward.1} parent=1 // pred_region
      %1264 = dma.done [#allocation5], 16
    $region37: #{rnn_forward.1} parent=1 // pred_fallthru
      _
    %1265 = vsyncpa [#allocation4], 1
    %1266 = vsyncpa [#allocation5], 1

</llo_original>
